<compile_context>
chip_gen: v7x
topology: tpu7x:2x2x1
jax: 0.10.0
libtpu: 0.0.40
codegen_flags: <defaults>
</compile_context>

<pallas_src>
import jax
import jax.numpy as jnp
from jax.experimental import pallas as pl
from jax.experimental.pallas import tpu as pltpu

# -------- model hyper-params (small, consistent with opt.* defaults) --------
P_INPUT_NC = 3      # opt.P_input_nc
BP_INPUT_NC = 18    # opt.BP_input_nc (pose keypoint heatmaps)
PARSE_NC = 12       # onehot parsing channels (hard-coded 12 in the module)
HIDDEN = 32         # stand-in for opt.ngf
SIZE = 16           # opt.fineSize (small for the demo)
BATCH = 2           # opt.batchSize

C_IN = P_INPUT_NC + 2 * BP_INPUT_NC + 2 * PARSE_NC   # 3 + 36 + 24 = 63
MAX_TILE_S = 8192                                    # lanes per grid step


def _round_up(x, m):
    return (x + m - 1) // m * m


def _pick_tile(s128, max_tile=MAX_TILE_S):
    """Largest multiple-of-128 divisor of s128 that is <= max_tile."""
    m = s128 // 128
    d_max = max(1, max_tile // 128)
    best = 1
    for d in range(1, min(m, d_max) + 1):
        if m % d == 0:
            best = d
    return 128 * best


def _netg_kernel(p1_ref, kp1_ref, kp2_ref, spl1_ref, spl2_ref,
                 w_p1_ref, w_kp1_ref, w_kp2_ref, w_spl1_ref, w_spl2_ref,
                 w_img_ref, w_parse_ref, b1_ref, b_img_ref, b_parse_ref,
                 img_ref, parse_ref):
    """One (single-batch, TILE_S-wide) spatial tile of the stand-in generator."""
    # hidden = relu(W1 @ cat(P1, KP1, KP2, SPL1, SPL2) + b1), computed as a sum
    # of channel-split partial dots (no 63-ch concat intermediate).
    # KP / SPL inputs are already bf16; only P1 (3 ch, f32) is cast here.
    h = (jnp.dot(w_p1_ref[...], p1_ref[0].astype(jnp.bfloat16),
                 preferred_element_type=jnp.float32)
         + jnp.dot(w_kp1_ref[...], kp1_ref[0],
                   preferred_element_type=jnp.float32)
         + jnp.dot(w_kp2_ref[...], kp2_ref[0],
                   preferred_element_type=jnp.float32)
         + jnp.dot(w_spl1_ref[...], spl1_ref[0],
                   preferred_element_type=jnp.float32)
         + jnp.dot(w_spl2_ref[...], spl2_ref[0],
                   preferred_element_type=jnp.float32)
         + b1_ref[...])                                # (HIDDEN, TILE_S) f32
    h = jnp.maximum(h, 0.0).astype(jnp.bfloat16)       # relu, feed MXU as bf16

    # Two heads, written to separate lane-dense outputs; tanh only on 3 rows.
    z_img = jnp.dot(w_img_ref[...], h,
                    preferred_element_type=jnp.float32) + b_img_ref[...]
    z_parse = jnp.dot(w_parse_ref[...], h,
                      preferred_element_type=jnp.float32) + b_parse_ref[...]
    img_ref[0] = jnp.tanh(z_img).astype(img_ref.dtype)
    parse_ref[0] = z_parse.astype(parse_ref.dtype)


def netg_pallas(xs, params, tile_s):
    """xs: 5 channel-major inputs, each (B, Ci, s_pad); s_pad % tile_s == 0."""
    p1, kp1, kp2, spl1, spl2 = xs
    (w_p1, w_kp1, w_kp2, w_spl1, w_spl2,
     w_img, w_parse, b1, b_img, b_parse) = params
    B = p1.shape[0]
    s_pad = p1.shape[-1]
    assert s_pad % tile_s == 0
    grid = (B, s_pad // tile_s)

    def xspec(c):
        return pl.BlockSpec((1, c, tile_s), lambda b, s: (b, 0, s))

    def wspec(shape):
        return pl.BlockSpec(shape, lambda b, s: (0, 0))

    img, parse = pl.pallas_call(
        _netg_kernel,
        out_shape=(jax.ShapeDtypeStruct((B, P_INPUT_NC, s_pad), jnp.bfloat16),
                   jax.ShapeDtypeStruct((B, PARSE_NC, s_pad), jnp.bfloat16)),
        grid_spec=pltpu.PrefetchScalarGridSpec(
            num_scalar_prefetch=0,
            grid=grid,
            in_specs=[
                xspec(P_INPUT_NC),                    # P1        (f32)
                xspec(BP_INPUT_NC),                   # KP1       (bf16)
                xspec(BP_INPUT_NC),                   # KP2       (bf16)
                xspec(PARSE_NC),                      # SPL1_onehot (bf16)
                xspec(PARSE_NC),                      # SPL2_onehot (bf16)
                wspec((HIDDEN, P_INPUT_NC)),          # W1 row-split pieces
                wspec((HIDDEN, BP_INPUT_NC)),
                wspec((HIDDEN, BP_INPUT_NC)),
                wspec((HIDDEN, PARSE_NC)),
                wspec((HIDDEN, PARSE_NC)),
                wspec((P_INPUT_NC, HIDDEN)),          # image head
                wspec((PARSE_NC, HIDDEN)),            # parse head
                wspec((HIDDEN, 1)),                   # b1
                wspec((P_INPUT_NC, 1)),               # b_img
                wspec((PARSE_NC, 1)),                 # b_parse
            ],
            out_specs=(
                pl.BlockSpec((1, P_INPUT_NC, tile_s), lambda b, s: (b, 0, s)),
                pl.BlockSpec((1, PARSE_NC, tile_s), lambda b, s: (b, 0, s)),
            ),
        ),
        compiler_params=pltpu.CompilerParams(
            dimension_semantics=("parallel", "parallel"),
            vmem_limit_bytes=48 * 1024 * 1024),
    )(p1, kp1, kp2, spl1, spl2,
      w_p1, w_kp1, w_kp2, w_spl1, w_spl2,
      w_img, w_parse, b1, b_img, b_parse)
    return img, parse


@jax.jit
def _transfer_forward(params, p1, kp1, kp2, spl1, spl2):
    B, _, H, W = p1.shape
    S = H * W
    s128 = _round_up(S, 128)
    tile_s = _pick_tile(s128)          # divisor of s128 -> no tile-boundary pad

    def prep(x):
        x = x.reshape(B, x.shape[1], S)               # NCHW -> (B, C, S), free
        if s128 != S:
            # Only the unavoidable <128-lane alignment pad; absent for typical
            # fineSize (H*W multiple of 128) and for the demo shapes.
            x = jnp.pad(x, ((0, 0), (0, 0), (0, s128 - S)))
        return x

    img, parse = netg_pallas(
        (prep(p1), prep(kp1), prep(kp2), prep(spl1), prep(spl2)),
        params, tile_s)                               # (B,3,s128), (B,12,s128)

    if s128 != S:
        img = img[:, :, :S]
        parse = parse[:, :, :S]
    fake_p2 = img.reshape(B, P_INPUT_NC, H, W)
    fake_parse = parse.reshape(B, PARSE_NC, H, W)
    return fake_p2, fake_parse


class TransferModelJAX:
    """JAX/Pallas port of TransferModel's forward path."""

    def __init__(self, key):
        k1, k2, k3 = jax.random.split(key, 3)
        scale = 0.05
        # W1 over the concatenated 63 input channels, row-split per input so
        # W1 @ cat(x_i) == sum_i W1_i @ x_i (no concat intermediate needed).
        w1 = scale * jax.random.normal(k1, (C_IN, HIDDEN), jnp.float32)
        o0 = 0
        o1 = o0 + P_INPUT_NC
        o2 = o1 + BP_INPUT_NC
        o3 = o2 + BP_INPUT_NC
        o4 = o3 + PARSE_NC
        o5 = o4 + PARSE_NC
        w_p1 = w1[o0:o1].T.astype(jnp.bfloat16)       # (HIDDEN, 3)
        w_kp1 = w1[o1:o2].T.astype(jnp.bfloat16)      # (HIDDEN, 18)
        w_kp2 = w1[o2:o3].T.astype(jnp.bfloat16)      # (HIDDEN, 18)
        w_spl1 = w1[o3:o4].T.astype(jnp.bfloat16)     # (HIDDEN, 12)
        w_spl2 = w1[o4:o5].T.astype(jnp.bfloat16)     # (HIDDEN, 12)
        # Heads: 3-ch tanh image, 12-ch parse logits.
        wi = scale * jax.random.normal(k2, (HIDDEN, P_INPUT_NC), jnp.float32)
        wp = scale * jax.random.normal(k3, (HIDDEN, PARSE_NC), jnp.float32)
        w_img = wi.T.astype(jnp.bfloat16)             # (3, HIDDEN)
        w_parse = wp.T.astype(jnp.bfloat16)           # (12, HIDDEN)
        b1 = jnp.zeros((HIDDEN, 1), jnp.float32)
        b_img = jnp.zeros((P_INPUT_NC, 1), jnp.float32)
        b_parse = jnp.zeros((PARSE_NC, 1), jnp.float32)
        self.params = (w_p1, w_kp1, w_kp2, w_spl1, w_spl2,
                       w_img, w_parse, b1, b_img, b_parse)
        # TODO(synk): the real netG (PINet multi-branch ParsingNet / attention /
        # refine nets from networks.define_G) is external to this module and is
        # replaced by a synthetic single-stage generator with identical I/O.

    def set_input(self, inputs):
        # KP heatmaps and one-hot SPL maps are produced (upstream) in bf16;
        # P1 stays f32.
        self.input_P1 = inputs["P1"]                     # (B, 3, H, W)  f32
        self.input_KP1 = inputs["KP1"]                   # (B, 18, H, W) bf16
        self.input_KP2 = inputs["KP2"]                   # (B, 18, H, W) bf16
        self.input_SPL1_onehot = inputs["SPL1_onehot"]   # (B, 12, H, W) bf16
        self.input_SPL2_onehot = inputs["SPL2_onehot"]   # (B, 12, H, W) bf16

    def forward(self):
        # G_input = [P1, cat(KP1, KP2, dim=1), SPL1_onehot, SPL2_onehot]
        # (the concat is realized implicitly inside the kernel via split W1)
        self.fake_p2, self.fake_parse = _transfer_forward(
            self.params, self.input_P1, self.input_KP1, self.input_KP2,
            self.input_SPL1_onehot, self.input_SPL2_onehot)
        return self.fake_p2, self.fake_parse


if __name__ == "__main__":
    key = jax.random.PRNGKey(0)
    k_p1, k_kp1, k_kp2, k_spl1, k_spl2, k_model = jax.random.split(key, 6)

    inputs = {
        "P1": jax.random.normal(
            k_p1, (BATCH, P_INPUT_NC, SIZE, SIZE), jnp.float32),
        # pose heatmaps / one-hot maps produced directly in bf16 (exactly
        # representable; halves their HBM read traffic in the kernel)
        "KP1": jax.random.normal(
            k_kp1, (BATCH, BP_INPUT_NC, SIZE, SIZE), jnp.bfloat16),
        "KP2": jax.random.normal(
            k_kp2, (BATCH, BP_INPUT_NC, SIZE, SIZE), jnp.bfloat16),
        "SPL1_onehot": jax.nn.one_hot(
            jax.random.randint(k_spl1, (BATCH, SIZE, SIZE), 0, PARSE_NC),
            PARSE_NC, axis=1, dtype=jnp.bfloat16),
        "SPL2_onehot": jax.nn.one_hot(
            jax.random.randint(k_spl2, (BATCH, SIZE, SIZE), 0, PARSE_NC),
            PARSE_NC, axis=1, dtype=jnp.bfloat16),
    }

    model = TransferModelJAX(k_model)
    model.set_input(inputs)
    fake_p2, fake_parse = model.forward()
    jax.block_until_ready((fake_p2, fake_parse))

    assert fake_p2.shape == (BATCH, P_INPUT_NC, SIZE, SIZE)
    assert fake_parse.shape == (BATCH, PARSE_NC, SIZE, SIZE)
    assert bool(jnp.isfinite(fake_p2.astype(jnp.float32)).all())
    assert bool(jnp.isfinite(fake_parse.astype(jnp.float32)).all())
    assert bool((jnp.abs(fake_p2.astype(jnp.float32)) <= 1.0).all())
    print("KERNEL_OK")
</pallas_src>

<mosaic_0001>
module attributes {stable_mosaic.version = 11 : i64} {
  func.func @_netg_kernel(%arg0: i32, %arg1: i32, %arg2: memref<1x3x256xf32, #tpu.memory_space<vmem>>, %arg3: memref<1x18x256xbf16, #tpu.memory_space<vmem>>, %arg4: memref<1x18x256xbf16, #tpu.memory_space<vmem>>, %arg5: memref<1x12x256xbf16, #tpu.memory_space<vmem>>, %arg6: memref<1x12x256xbf16, #tpu.memory_space<vmem>>, %arg7: memref<32x3xbf16, #tpu.memory_space<vmem>>, %arg8: memref<32x18xbf16, #tpu.memory_space<vmem>>, %arg9: memref<32x18xbf16, #tpu.memory_space<vmem>>, %arg10: memref<32x12xbf16, #tpu.memory_space<vmem>>, %arg11: memref<32x12xbf16, #tpu.memory_space<vmem>>, %arg12: memref<3x32xbf16, #tpu.memory_space<vmem>>, %arg13: memref<12x32xbf16, #tpu.memory_space<vmem>>, %arg14: memref<32x1xf32, #tpu.memory_space<vmem>>, %arg15: memref<3x1xf32, #tpu.memory_space<vmem>>, %arg16: memref<12x1xf32, #tpu.memory_space<vmem>>, %arg17: memref<1x3x256xbf16, #tpu.memory_space<vmem>>, %arg18: memref<1x12x256xbf16, #tpu.memory_space<vmem>>) attributes {dimension_semantics = [#tpu.dimension_semantics<parallel>, #tpu.dimension_semantics<parallel>], iteration_bounds = array<i64: 2, 1>, scalar_prefetch = 0 : i64, scratch_operands = 0 : i64, tpu.core_type = #tpu.core_type<tc>, window_params = [{transform_indices = @transform_0, window_bounds = array<i64: 1, 3, 256>}, {transform_indices = @transform_1, window_bounds = array<i64: 1, 18, 256>}, {transform_indices = @transform_2, window_bounds = array<i64: 1, 18, 256>}, {transform_indices = @transform_3, window_bounds = array<i64: 1, 12, 256>}, {transform_indices = @transform_4, window_bounds = array<i64: 1, 12, 256>}, {pipeline_mode = #tpu.pipeline_mode<synchronous>, transform_indices = @transform_5, window_bounds = array<i64: 32, 3>}, {pipeline_mode = #tpu.pipeline_mode<synchronous>, transform_indices = @transform_6, window_bounds = array<i64: 32, 18>}, {pipeline_mode = #tpu.pipeline_mode<synchronous>, transform_indices = @transform_7, window_bounds = array<i64: 32, 18>}, {pipeline_mode = #tpu.pipeline_mode<synchronous>, transform_indices = @transform_8, window_bounds = array<i64: 32, 12>}, {pipeline_mode = #tpu.pipeline_mode<synchronous>, transform_indices = @transform_9, window_bounds = array<i64: 32, 12>}, {pipeline_mode = #tpu.pipeline_mode<synchronous>, transform_indices = @transform_10, window_bounds = array<i64: 3, 32>}, {pipeline_mode = #tpu.pipeline_mode<synchronous>, transform_indices = @transform_11, window_bounds = array<i64: 12, 32>}, {pipeline_mode = #tpu.pipeline_mode<synchronous>, transform_indices = @transform_12, window_bounds = array<i64: 32, 1>}, {pipeline_mode = #tpu.pipeline_mode<synchronous>, transform_indices = @transform_13, window_bounds = array<i64: 3, 1>}, {pipeline_mode = #tpu.pipeline_mode<synchronous>, transform_indices = @transform_14, window_bounds = array<i64: 12, 1>}, {transform_indices = @transform_15, window_bounds = array<i64: 1, 3, 256>}, {transform_indices = @transform_16, window_bounds = array<i64: 1, 12, 256>}]} {
    %c0 = arith.constant 0 : index
    %c0_0 = arith.constant 0 : index
    %0 = vector.load %arg7[%c0, %c0_0] : memref<32x3xbf16, #tpu.memory_space<vmem>>, vector<32x3xbf16>
    %c0_1 = arith.constant 0 : index
    %c0_2 = arith.constant 0 : index
    %c0_3 = arith.constant 0 : index
    %1 = vector.load %arg2[%c0_1, %c0_2, %c0_3] : memref<1x3x256xf32, #tpu.memory_space<vmem>>, vector<1x3x256xf32>
    %2 = vector.shape_cast %1 : vector<1x3x256xf32> to vector<3x256xf32>
    %3 = arith.truncf %2 : vector<3x256xf32> to vector<3x256xbf16>
    %cst = arith.constant dense<0.000000e+00> : vector<32x256xf32>
    %4 = tpu.matmul %0, %3, %cst {dimension_numbers = #tpu.dot_dimension_numbers<[1], [0], [0], [1], [0, 0, 1, 1], [], []>} : vector<32x3xbf16>, vector<3x256xbf16>, vector<32x256xf32> -> vector<32x256xf32>
    %c0_4 = arith.constant 0 : index
    %c0_5 = arith.constant 0 : index
    %5 = vector.load %arg8[%c0_4, %c0_5] : memref<32x18xbf16, #tpu.memory_space<vmem>>, vector<32x18xbf16>
    %c0_6 = arith.constant 0 : index
    %c0_7 = arith.constant 0 : index
    %c0_8 = arith.constant 0 : index
    %6 = vector.load %arg3[%c0_6, %c0_7, %c0_8] : memref<1x18x256xbf16, #tpu.memory_space<vmem>>, vector<1x18x256xbf16>
    %7 = vector.shape_cast %6 : vector<1x18x256xbf16> to vector<18x256xbf16>
    %cst_9 = arith.constant dense<0.000000e+00> : vector<32x256xf32>
    %8 = tpu.matmul %5, %7, %cst_9 {dimension_numbers = #tpu.dot_dimension_numbers<[1], [0], [0], [1], [0, 0, 1, 1], [], []>} : vector<32x18xbf16>, vector<18x256xbf16>, vector<32x256xf32> -> vector<32x256xf32>
    %9 = arith.addf %4, %8 : vector<32x256xf32>
    %c0_10 = arith.constant 0 : index
    %c0_11 = arith.constant 0 : index
    %10 = vector.load %arg9[%c0_10, %c0_11] : memref<32x18xbf16, #tpu.memory_space<vmem>>, vector<32x18xbf16>
    %c0_12 = arith.constant 0 : index
    %c0_13 = arith.constant 0 : index
    %c0_14 = arith.constant 0 : index
    %11 = vector.load %arg4[%c0_12, %c0_13, %c0_14] : memref<1x18x256xbf16, #tpu.memory_space<vmem>>, vector<1x18x256xbf16>
    %12 = vector.shape_cast %11 : vector<1x18x256xbf16> to vector<18x256xbf16>
    %cst_15 = arith.constant dense<0.000000e+00> : vector<32x256xf32>
    %13 = tpu.matmul %10, %12, %cst_15 {dimension_numbers = #tpu.dot_dimension_numbers<[1], [0], [0], [1], [0, 0, 1, 1], [], []>} : vector<32x18xbf16>, vector<18x256xbf16>, vector<32x256xf32> -> vector<32x256xf32>
    %14 = arith.addf %9, %13 : vector<32x256xf32>
    %c0_16 = arith.constant 0 : index
    %c0_17 = arith.constant 0 : index
    %15 = vector.load %arg10[%c0_16, %c0_17] : memref<32x12xbf16, #tpu.memory_space<vmem>>, vector<32x12xbf16>
    %c0_18 = arith.constant 0 : index
    %c0_19 = arith.constant 0 : index
    %c0_20 = arith.constant 0 : index
    %16 = vector.load %arg5[%c0_18, %c0_19, %c0_20] : memref<1x12x256xbf16, #tpu.memory_space<vmem>>, vector<1x12x256xbf16>
    %17 = vector.shape_cast %16 : vector<1x12x256xbf16> to vector<12x256xbf16>
    %cst_21 = arith.constant dense<0.000000e+00> : vector<32x256xf32>
    %18 = tpu.matmul %15, %17, %cst_21 {dimension_numbers = #tpu.dot_dimension_numbers<[1], [0], [0], [1], [0, 0, 1, 1], [], []>} : vector<32x12xbf16>, vector<12x256xbf16>, vector<32x256xf32> -> vector<32x256xf32>
    %19 = arith.addf %14, %18 : vector<32x256xf32>
    %c0_22 = arith.constant 0 : index
    %c0_23 = arith.constant 0 : index
    %20 = vector.load %arg11[%c0_22, %c0_23] : memref<32x12xbf16, #tpu.memory_space<vmem>>, vector<32x12xbf16>
    %c0_24 = arith.constant 0 : index
    %c0_25 = arith.constant 0 : index
    %c0_26 = arith.constant 0 : index
    %21 = vector.load %arg6[%c0_24, %c0_25, %c0_26] : memref<1x12x256xbf16, #tpu.memory_space<vmem>>, vector<1x12x256xbf16>
    %22 = vector.shape_cast %21 : vector<1x12x256xbf16> to vector<12x256xbf16>
    %cst_27 = arith.constant dense<0.000000e+00> : vector<32x256xf32>
    %23 = tpu.matmul %20, %22, %cst_27 {dimension_numbers = #tpu.dot_dimension_numbers<[1], [0], [0], [1], [0, 0, 1, 1], [], []>} : vector<32x12xbf16>, vector<12x256xbf16>, vector<32x256xf32> -> vector<32x256xf32>
    %24 = arith.addf %19, %23 : vector<32x256xf32>
    %c0_28 = arith.constant 0 : index
    %c0_29 = arith.constant 0 : index
    %25 = vector.load %arg14[%c0_28, %c0_29] : memref<32x1xf32, #tpu.memory_space<vmem>>, vector<32x1xf32>
    %26 = vector.broadcast %25 : vector<32x1xf32> to vector<32x256xf32>
    %27 = arith.addf %24, %26 : vector<32x256xf32>
    %cst_30 = arith.constant 0.000000e+00 : f32
    %28 = vector.broadcast %cst_30 : f32 to vector<32x256xf32>
    %29 = arith.maximumf %27, %28 : vector<32x256xf32>
    %30 = arith.truncf %29 : vector<32x256xf32> to vector<32x256xbf16>
    %c0_31 = arith.constant 0 : index
    %c0_32 = arith.constant 0 : index
    %31 = vector.load %arg12[%c0_31, %c0_32] : memref<3x32xbf16, #tpu.memory_space<vmem>>, vector<3x32xbf16>
    %cst_33 = arith.constant dense<0.000000e+00> : vector<3x256xf32>
    %32 = tpu.matmul %31, %30, %cst_33 {dimension_numbers = #tpu.dot_dimension_numbers<[1], [0], [0], [1], [0, 0, 1, 1], [], []>} : vector<3x32xbf16>, vector<32x256xbf16>, vector<3x256xf32> -> vector<3x256xf32>
    %c0_34 = arith.constant 0 : index
    %c0_35 = arith.constant 0 : index
    %33 = vector.load %arg15[%c0_34, %c0_35] : memref<3x1xf32, #tpu.memory_space<vmem>>, vector<3x1xf32>
    %34 = vector.broadcast %33 : vector<3x1xf32> to vector<3x256xf32>
    %35 = arith.addf %32, %34 : vector<3x256xf32>
    %c0_36 = arith.constant 0 : index
    %c0_37 = arith.constant 0 : index
    %36 = vector.load %arg13[%c0_36, %c0_37] : memref<12x32xbf16, #tpu.memory_space<vmem>>, vector<12x32xbf16>
    %cst_38 = arith.constant dense<0.000000e+00> : vector<12x256xf32>
    %37 = tpu.matmul %36, %30, %cst_38 {dimension_numbers = #tpu.dot_dimension_numbers<[1], [0], [0], [1], [0, 0, 1, 1], [], []>} : vector<12x32xbf16>, vector<32x256xbf16>, vector<12x256xf32> -> vector<12x256xf32>
    %c0_39 = arith.constant 0 : index
    %c0_40 = arith.constant 0 : index
    %38 = vector.load %arg16[%c0_39, %c0_40] : memref<12x1xf32, #tpu.memory_space<vmem>>, vector<12x1xf32>
    %39 = vector.broadcast %38 : vector<12x1xf32> to vector<12x256xf32>
    %40 = arith.addf %37, %39 : vector<12x256xf32>
    %41 = math.tanh %35 : vector<3x256xf32>
    %42 = arith.truncf %41 : vector<3x256xf32> to vector<3x256xbf16>
    %c0_41 = arith.constant 0 : index
    %c0_42 = arith.constant 0 : index
    %c0_43 = arith.constant 0 : index
    %43 = vector.load %arg17[%c0_41, %c0_42, %c0_43] : memref<1x3x256xbf16, #tpu.memory_space<vmem>>, vector<1x3x256xbf16>
    %44 = vector.shape_cast %43 : vector<1x3x256xbf16> to vector<3x256xbf16>
    %45 = vector.shape_cast %42 : vector<3x256xbf16> to vector<1x3x256xbf16>
    tpu.vector_store %arg17[%c0_41, %c0_42, %c0_43], %45 {strides = array<i32>} : memref<1x3x256xbf16, #tpu.memory_space<vmem>>, vector<1x3x256xbf16>,
    %46 = arith.truncf %40 : vector<12x256xf32> to vector<12x256xbf16>
    %c0_44 = arith.constant 0 : index
    %c0_45 = arith.constant 0 : index
    %c0_46 = arith.constant 0 : index
    %47 = vector.load %arg18[%c0_44, %c0_45, %c0_46] : memref<1x12x256xbf16, #tpu.memory_space<vmem>>, vector<1x12x256xbf16>
    %48 = vector.shape_cast %47 : vector<1x12x256xbf16> to vector<12x256xbf16>
    %49 = vector.shape_cast %46 : vector<12x256xbf16> to vector<1x12x256xbf16>
    tpu.vector_store %arg18[%c0_44, %c0_45, %c0_46], %49 {strides = array<i32>} : memref<1x12x256xbf16, #tpu.memory_space<vmem>>, vector<1x12x256xbf16>,
    return
  }
  func.func @transform_0(%arg0: i32, %arg1: i32) -> (i32, i32, i32) {
    %c0_i32 = arith.constant 0 : i32
    %c0_i32_0 = arith.constant 0 : i32
    return %arg0, %c0_i32, %arg1 : i32, i32, i32
  }
  func.func @transform_1(%arg0: i32, %arg1: i32) -> (i32, i32, i32) {
    %c0_i32 = arith.constant 0 : i32
    %c0_i32_0 = arith.constant 0 : i32
    return %arg0, %c0_i32, %arg1 : i32, i32, i32
  }
  func.func @transform_2(%arg0: i32, %arg1: i32) -> (i32, i32, i32) {
    %c0_i32 = arith.constant 0 : i32
    %c0_i32_0 = arith.constant 0 : i32
    return %arg0, %c0_i32, %arg1 : i32, i32, i32
  }
  func.func @transform_3(%arg0: i32, %arg1: i32) -> (i32, i32, i32) {
    %c0_i32 = arith.constant 0 : i32
    %c0_i32_0 = arith.constant 0 : i32
    return %arg0, %c0_i32, %arg1 : i32, i32, i32
  }
  func.func @transform_4(%arg0: i32, %arg1: i32) -> (i32, i32, i32) {
    %c0_i32 = arith.constant 0 : i32
    %c0_i32_0 = arith.constant 0 : i32
    return %arg0, %c0_i32, %arg1 : i32, i32, i32
  }
  func.func @transform_5(%arg0: i32, %arg1: i32) -> (i32, i32) {
    %c0_i32 = arith.constant 0 : i32
    %c0_i32_0 = arith.constant 0 : i32
    %c0_i32_1 = arith.constant 0 : i32
    return %c0_i32, %c0_i32_0 : i32, i32
  }
  func.func @transform_6(%arg0: i32, %arg1: i32) -> (i32, i32) {
    %c0_i32 = arith.constant 0 : i32
    %c0_i32_0 = arith.constant 0 : i32
    %c0_i32_1 = arith.constant 0 : i32
    return %c0_i32, %c0_i32_0 : i32, i32
  }
  func.func @transform_7(%arg0: i32, %arg1: i32) -> (i32, i32) {
    %c0_i32 = arith.constant 0 : i32
    %c0_i32_0 = arith.constant 0 : i32
    %c0_i32_1 = arith.constant 0 : i32
    return %c0_i32, %c0_i32_0 : i32, i32
  }
  func.func @transform_8(%arg0: i32, %arg1: i32) -> (i32, i32) {
    %c0_i32 = arith.constant 0 : i32
    %c0_i32_0 = arith.constant 0 : i32
    %c0_i32_1 = arith.constant 0 : i32
    return %c0_i32, %c0_i32_0 : i32, i32
  }
  func.func @transform_9(%arg0: i32, %arg1: i32) -> (i32, i32) {
    %c0_i32 = arith.constant 0 : i32
    %c0_i32_0 = arith.constant 0 : i32
    %c0_i32_1 = arith.constant 0 : i32
    return %c0_i32, %c0_i32_0 : i32, i32
  }
  func.func @transform_10(%arg0: i32, %arg1: i32) -> (i32, i32) {
    %c0_i32 = arith.constant 0 : i32
    %c0_i32_0 = arith.constant 0 : i32
    %c0_i32_1 = arith.constant 0 : i32
    return %c0_i32, %c0_i32_0 : i32, i32
  }
  func.func @transform_11(%arg0: i32, %arg1: i32) -> (i32, i32) {
    %c0_i32 = arith.constant 0 : i32
    %c0_i32_0 = arith.constant 0 : i32
    %c0_i32_1 = arith.constant 0 : i32
    return %c0_i32, %c0_i32_0 : i32, i32
  }
  func.func @transform_12(%arg0: i32, %arg1: i32) -> (i32, i32) {
    %c0_i32 = arith.constant 0 : i32
    %c0_i32_0 = arith.constant 0 : i32
    %c0_i32_1 = arith.constant 0 : i32
    return %c0_i32, %c0_i32_0 : i32, i32
  }
  func.func @transform_13(%arg0: i32, %arg1: i32) -> (i32, i32) {
    %c0_i32 = arith.constant 0 : i32
    %c0_i32_0 = arith.constant 0 : i32
    %c0_i32_1 = arith.constant 0 : i32
    return %c0_i32, %c0_i32_0 : i32, i32
  }
  func.func @transform_14(%arg0: i32, %arg1: i32) -> (i32, i32) {
    %c0_i32 = arith.constant 0 : i32
    %c0_i32_0 = arith.constant 0 : i32
    %c0_i32_1 = arith.constant 0 : i32
    return %c0_i32, %c0_i32_0 : i32, i32
  }
  func.func @transform_15(%arg0: i32, %arg1: i32) -> (i32, i32, i32) {
    %c0_i32 = arith.constant 0 : i32
    %c0_i32_0 = arith.constant 0 : i32
    return %arg0, %c0_i32, %arg1 : i32, i32, i32
  }
  func.func @transform_16(%arg0: i32, %arg1: i32) -> (i32, i32, i32) {
    %c0_i32 = arith.constant 0 : i32
    %c0_i32_0 = arith.constant 0 : i32
    return %arg0, %c0_i32, %arg1 : i32, i32, i32
  }
}

</mosaic_0001>

<llo_original>
// kernel: _transfer_forward.1
$region0: #{_transfer_forward.1}
  #allocation0 [shape = 'u32[]', space=smem, size = 0x4, offset = 0x4, fixed_abs, tag = 'smem constant byte address 0x4 - core index']
  #allocation1 [shape = 'u32[144,128]{1,0:T(1,128)}', space=vmem, size = 0x12000, scoped, tag = 'internal scratch']
  %s0 = inlined_call_operand.vmem [shape: f32[2,3,256], index: 0, kind: input, shape index: {}]
  %s1 = inlined_call_operand.vmem [shape: bf16[2,18,256], index: 1, kind: input, shape index: {}]
  %s2 = inlined_call_operand.vmem [shape: bf16[2,18,256], index: 2, kind: input, shape index: {}]
  %s3 = inlined_call_operand.vmem [shape: bf16[2,12,256], index: 3, kind: input, shape index: {}]
  %s4 = inlined_call_operand.vmem [shape: bf16[2,12,256], index: 4, kind: input, shape index: {}]
  %s5 = inlined_call_operand.vmem [shape: bf16[32,3], index: 5, kind: input, shape index: {}]
  %s6 = inlined_call_operand.vmem [shape: bf16[32,18], index: 6, kind: input, shape index: {}]
  %s7 = inlined_call_operand.vmem [shape: bf16[32,18], index: 7, kind: input, shape index: {}]
  %s8 = inlined_call_operand.vmem [shape: bf16[32,12], index: 8, kind: input, shape index: {}]
  %s9 = inlined_call_operand.vmem [shape: bf16[32,12], index: 9, kind: input, shape index: {}]
  %s10 = inlined_call_operand.vmem [shape: bf16[3,32], index: 10, kind: input, shape index: {}]
  %s11 = inlined_call_operand.vmem [shape: bf16[12,32], index: 11, kind: input, shape index: {}]
  %s12 = inlined_call_operand.vmem [shape: f32[32,1], index: 12, kind: input, shape index: {}]
  %s13 = inlined_call_operand.vmem [shape: f32[3,1], index: 13, kind: input, shape index: {}]
  %s14 = inlined_call_operand.vmem [shape: f32[12,1], index: 14, kind: input, shape index: {}]
  %s15 = inlined_call_operand.vmem [shape: bf16[2,3,256], index: 15, kind: output, shape index: {0}]
  %s16 = inlined_call_operand.vmem [shape: bf16[2,12,256], index: 16, kind: output, shape index: {1}]
  %17 = xla_tuple %s15, %s16
  %s18 = sld [smem:[#allocation0]]
  $region101: #{_transfer_forward.1} parent=0
    _
  %s20 = ssub.s32 1, %s18
  %s21 = scalar_select 0, %s20, %s18
  loop: start=0, step=1, limit=4
  $region2: #{_transfer_forward.1} parent=0 // loop_pre_header
    _
  $region3: #{_transfer_forward.1} parent=0 // loop_header
    %s23 = sphi 0, %s27
    %p24 = scmp.ge.s32.totalorder %s23, 4
    %s30 = sphi 0, %s42
    %s31 = sphi 0, %s38
    %s32 = sphi 0, %s30
    %s33 = sphi 0, %s31
    %s34 = sphi 0, %s32
    %s35 = sphi 0, %s33
    %s47 = sphi 0, %s49
    %s50 = sphi 0, %s47
    %s51 = sphi 0, %s50
    %s67 = sphi 0, %s51
    %s75 = sphi 0, %s77
    %s78 = sphi 0, %s75
    %s79 = sphi 0, %s78
    %s95 = sphi 0, %s79
    %s103 = sphi 0, %s105
    %s106 = sphi 0, %s103
    %s107 = sphi 0, %s106
    %s123 = sphi 0, %s107
    %s131 = sphi 0, %s133
    %s134 = sphi 0, %s131
    %s135 = sphi 0, %s134
    %s151 = sphi 0, %s135
    %s159 = sphi 0, %s161
    %s162 = sphi 0, %s159
    %s163 = sphi 0, %s162
    %s179 = sphi 0, %s163
    %s183 = sphi 0, %s183
    %s185 = sphi 0, %s183
    %s186 = sphi 0, %s185
    %s200 = sphi 0, %s186
    %s204 = sphi 0, %s204
    %s206 = sphi 0, %s204
    %s207 = sphi 0, %s206
    %s221 = sphi 0, %s207
    %s225 = sphi 0, %s225
    %s227 = sphi 0, %s225
    %s228 = sphi 0, %s227
    %s242 = sphi 0, %s228
    %s246 = sphi 0, %s246
    %s248 = sphi 0, %s246
    %s249 = sphi 0, %s248
    %s263 = sphi 0, %s249
    %s267 = sphi 0, %s267
    %s269 = sphi 0, %s267
    %s270 = sphi 0, %s269
    %s284 = sphi 0, %s270
    %s288 = sphi 0, %s288
    %s290 = sphi 0, %s288
    %s291 = sphi 0, %s290
    %s305 = sphi 0, %s291
    %s309 = sphi 0, %s309
    %s311 = sphi 0, %s309
    %s312 = sphi 0, %s311
    %s326 = sphi 0, %s312
    %s330 = sphi 0, %s330
    %s332 = sphi 0, %s330
    %s333 = sphi 0, %s332
    %s347 = sphi 0, %s333
    %s351 = sphi 0, %s351
    %s353 = sphi 0, %s351
    %s354 = sphi 0, %s353
    %s368 = sphi 0, %s354
    %s372 = sphi 0, %s372
    %s374 = sphi 0, %s372
    %s375 = sphi 0, %s374
    %s389 = sphi 0, %s375
    %s397 = sphi 0, %s399
    %s400 = sphi 0, %s397
    %s401 = sphi 0, %s400
    %s417 = sphi 0, %s401
    %s425 = sphi 0, %s427
    %s428 = sphi 0, %s425
    %s429 = sphi 0, %s428
    %s445 = sphi 0, %s429
  $region4: #{_transfer_forward.1} parent=0 // loop_header_branch
    %26 = sbr.rel (%p24) target = $region8
  $region5: #{_transfer_forward.1} parent=0 // loop_body
    %s28 = ssub.s32 %s23, 1
    %s29 = ssub.s32 %s23, 2
    %s36 = sadd.s32 1, %s31
    %p37 = scmp.ge.s32.totalorder %s36, 1
    %s38 = scalar_select %p37, 0, %s36
    %s39 = sadd.s32 1, %s30
    %s40 = scalar_select %p37, %s39, %s30
    %p41 = scmp.ge.s32.totalorder %s40, 2
    %s42 = scalar_select %p41, 0, %s40
    %s43 = ssub.s32 %s30, %s42
    %s44 = ssub.s32 %s31, %s38
    %s45 = sor.u32 %s43, %s44
    %p46 = scmp.eq.s32.totalorder %s45, 0
    %s48 = sadd.s32 %s47, 1
    %s49 = scalar_select %p46, %s47, %s48
    %p52 = pneg %p46
    %p53 = scmp.eq.s32.totalorder %s23, 1
    %p54 = por %p52, %p53
    %p55 = scmp.ne.s32.totalorder %s47, %s50
    %p56 = scmp.eq.s32.totalorder %s23, 0
    %p57 = por %p55, %p56
    %p58 = scmp.ne.s32.totalorder %s47, %s50
    %p59 = scmp.eq.s32.totalorder %s28, 1
    %p60 = por %p58, %p59
    %p61 = scmp.ne.s32.totalorder %s50, %s51
    %p62 = scmp.eq.s32.totalorder %s28, 0
    %p63 = por %p61, %p62
    %p64 = scmp.ne.s32.totalorder %s50, %s51
    %p65 = scmp.eq.s32.totalorder %s29, 1
    %p66 = por %p64, %p65
    %p68 = scmp.ne.s32.totalorder %s51, %s67
    %p69 = scmp.eq.s32.totalorder %s29, 0
    %p70 = por %p68, %p69
    %s71 = ssub.s32 %s30, %s42
    %s72 = ssub.s32 %s31, %s38
    %s73 = sor.u32 %s71, %s72
    %p74 = scmp.eq.s32.totalorder %s73, 0
    %s76 = sadd.s32 %s75, 1
    %s77 = scalar_select %p74, %s75, %s76
    %p80 = pneg %p74
    %p81 = scmp.eq.s32.totalorder %s23, 1
    %p82 = por %p80, %p81
    %p83 = scmp.ne.s32.totalorder %s75, %s78
    %p84 = scmp.eq.s32.totalorder %s23, 0
    %p85 = por %p83, %p84
    %p86 = scmp.ne.s32.totalorder %s75, %s78
    %p87 = scmp.eq.s32.totalorder %s28, 1
    %p88 = por %p86, %p87
    %p89 = scmp.ne.s32.totalorder %s78, %s79
    %p90 = scmp.eq.s32.totalorder %s28, 0
    %p91 = por %p89, %p90
    %p92 = scmp.ne.s32.totalorder %s78, %s79
    %p93 = scmp.eq.s32.totalorder %s29, 1
    %p94 = por %p92, %p93
    %p96 = scmp.ne.s32.totalorder %s79, %s95
    %p97 = scmp.eq.s32.totalorder %s29, 0
    %p98 = por %p96, %p97
    %s99 = ssub.s32 %s30, %s42
    %s100 = ssub.s32 %s31, %s38
    %s101 = sor.u32 %s99, %s100
    %p102 = scmp.eq.s32.totalorder %s101, 0
    %s104 = sadd.s32 %s103, 1
    %s105 = scalar_select %p102, %s103, %s104
    %p108 = pneg %p102
    %p109 = scmp.eq.s32.totalorder %s23, 1
    %p110 = por %p108, %p109
    %p111 = scmp.ne.s32.totalorder %s103, %s106
    %p112 = scmp.eq.s32.totalorder %s23, 0
    %p113 = por %p111, %p112
    %p114 = scmp.ne.s32.totalorder %s103, %s106
    %p115 = scmp.eq.s32.totalorder %s28, 1
    %p116 = por %p114, %p115
    %p117 = scmp.ne.s32.totalorder %s106, %s107
    %p118 = scmp.eq.s32.totalorder %s28, 0
    %p119 = por %p117, %p118
    %p120 = scmp.ne.s32.totalorder %s106, %s107
    %p121 = scmp.eq.s32.totalorder %s29, 1
    %p122 = por %p120, %p121
    %p124 = scmp.ne.s32.totalorder %s107, %s123
    %p125 = scmp.eq.s32.totalorder %s29, 0
    %p126 = por %p124, %p125
    %s127 = ssub.s32 %s30, %s42
    %s128 = ssub.s32 %s31, %s38
    %s129 = sor.u32 %s127, %s128
    %p130 = scmp.eq.s32.totalorder %s129, 0
    %s132 = sadd.s32 %s131, 1
    %s133 = scalar_select %p130, %s131, %s132
    %p136 = pneg %p130
    %p137 = scmp.eq.s32.totalorder %s23, 1
    %p138 = por %p136, %p137
    %p139 = scmp.ne.s32.totalorder %s131, %s134
    %p140 = scmp.eq.s32.totalorder %s23, 0
    %p141 = por %p139, %p140
    %p142 = scmp.ne.s32.totalorder %s131, %s134
    %p143 = scmp.eq.s32.totalorder %s28, 1
    %p144 = por %p142, %p143
    %p145 = scmp.ne.s32.totalorder %s134, %s135
    %p146 = scmp.eq.s32.totalorder %s28, 0
    %p147 = por %p145, %p146
    %p148 = scmp.ne.s32.totalorder %s134, %s135
    %p149 = scmp.eq.s32.totalorder %s29, 1
    %p150 = por %p148, %p149
    %p152 = scmp.ne.s32.totalorder %s135, %s151
    %p153 = scmp.eq.s32.totalorder %s29, 0
    %p154 = por %p152, %p153
    %s155 = ssub.s32 %s30, %s42
    %s156 = ssub.s32 %s31, %s38
    %s157 = sor.u32 %s155, %s156
    %p158 = scmp.eq.s32.totalorder %s157, 0
    %s160 = sadd.s32 %s159, 1
    %s161 = scalar_select %p158, %s159, %s160
    %p164 = pneg %p158
    %p165 = scmp.eq.s32.totalorder %s23, 1
    %p166 = por %p164, %p165
    %p167 = scmp.ne.s32.totalorder %s159, %s162
    %p168 = scmp.eq.s32.totalorder %s23, 0
    %p169 = por %p167, %p168
    %p170 = scmp.ne.s32.totalorder %s159, %s162
    %p171 = scmp.eq.s32.totalorder %s28, 1
    %p172 = por %p170, %p171
    %p173 = scmp.ne.s32.totalorder %s162, %s163
    %p174 = scmp.eq.s32.totalorder %s28, 0
    %p175 = por %p173, %p174
    %p176 = scmp.ne.s32.totalorder %s162, %s163
    %p177 = scmp.eq.s32.totalorder %s29, 1
    %p178 = por %p176, %p177
    %p180 = scmp.ne.s32.totalorder %s163, %s179
    %p181 = scmp.eq.s32.totalorder %s29, 0
    %p182 = por %p180, %p181
    %s184 = sadd.s32 %s183, 1
    %p187 = scmp.eq.s32.totalorder %s23, 1
    %p188 = scmp.ne.s32.totalorder %s183, %s185
    %p189 = scmp.eq.s32.totalorder %s23, 0
    %p190 = por %p188, %p189
    %p191 = scmp.ne.s32.totalorder %s183, %s185
    %p192 = scmp.eq.s32.totalorder %s28, 1
    %p193 = por %p191, %p192
    %p194 = scmp.ne.s32.totalorder %s185, %s186
    %p195 = scmp.eq.s32.totalorder %s28, 0
    %p196 = por %p194, %p195
    %p197 = scmp.ne.s32.totalorder %s185, %s186
    %p198 = scmp.eq.s32.totalorder %s29, 1
    %p199 = por %p197, %p198
    %p201 = scmp.ne.s32.totalorder %s186, %s200
    %p202 = scmp.eq.s32.totalorder %s29, 0
    %p203 = por %p201, %p202
    %s205 = sadd.s32 %s204, 1
    %p208 = scmp.eq.s32.totalorder %s23, 1
    %p209 = scmp.ne.s32.totalorder %s204, %s206
    %p210 = scmp.eq.s32.totalorder %s23, 0
    %p211 = por %p209, %p210
    %p212 = scmp.ne.s32.totalorder %s204, %s206
    %p213 = scmp.eq.s32.totalorder %s28, 1
    %p214 = por %p212, %p213
    %p215 = scmp.ne.s32.totalorder %s206, %s207
    %p216 = scmp.eq.s32.totalorder %s28, 0
    %p217 = por %p215, %p216
    %p218 = scmp.ne.s32.totalorder %s206, %s207
    %p219 = scmp.eq.s32.totalorder %s29, 1
    %p220 = por %p218, %p219
    %p222 = scmp.ne.s32.totalorder %s207, %s221
    %p223 = scmp.eq.s32.totalorder %s29, 0
    %p224 = por %p222, %p223
    %s226 = sadd.s32 %s225, 1
    %p229 = scmp.eq.s32.totalorder %s23, 1
    %p230 = scmp.ne.s32.totalorder %s225, %s227
    %p231 = scmp.eq.s32.totalorder %s23, 0
    %p232 = por %p230, %p231
    %p233 = scmp.ne.s32.totalorder %s225, %s227
    %p234 = scmp.eq.s32.totalorder %s28, 1
    %p235 = por %p233, %p234
    %p236 = scmp.ne.s32.totalorder %s227, %s228
    %p237 = scmp.eq.s32.totalorder %s28, 0
    %p238 = por %p236, %p237
    %p239 = scmp.ne.s32.totalorder %s227, %s228
    %p240 = scmp.eq.s32.totalorder %s29, 1
    %p241 = por %p239, %p240
    %p243 = scmp.ne.s32.totalorder %s228, %s242
    %p244 = scmp.eq.s32.totalorder %s29, 0
    %p245 = por %p243, %p244
    %s247 = sadd.s32 %s246, 1
    %p250 = scmp.eq.s32.totalorder %s23, 1
    %p251 = scmp.ne.s32.totalorder %s246, %s248
    %p252 = scmp.eq.s32.totalorder %s23, 0
    %p253 = por %p251, %p252
    %p254 = scmp.ne.s32.totalorder %s246, %s248
    %p255 = scmp.eq.s32.totalorder %s28, 1
    %p256 = por %p254, %p255
    %p257 = scmp.ne.s32.totalorder %s248, %s249
    %p258 = scmp.eq.s32.totalorder %s28, 0
    %p259 = por %p257, %p258
    %p260 = scmp.ne.s32.totalorder %s248, %s249
    %p261 = scmp.eq.s32.totalorder %s29, 1
    %p262 = por %p260, %p261
    %p264 = scmp.ne.s32.totalorder %s249, %s263
    %p265 = scmp.eq.s32.totalorder %s29, 0
    %p266 = por %p264, %p265
    %s268 = sadd.s32 %s267, 1
    %p271 = scmp.eq.s32.totalorder %s23, 1
    %p272 = scmp.ne.s32.totalorder %s267, %s269
    %p273 = scmp.eq.s32.totalorder %s23, 0
    %p274 = por %p272, %p273
    %p275 = scmp.ne.s32.totalorder %s267, %s269
    %p276 = scmp.eq.s32.totalorder %s28, 1
    %p277 = por %p275, %p276
    %p278 = scmp.ne.s32.totalorder %s269, %s270
    %p279 = scmp.eq.s32.totalorder %s28, 0
    %p280 = por %p278, %p279
    %p281 = scmp.ne.s32.totalorder %s269, %s270
    %p282 = scmp.eq.s32.totalorder %s29, 1
    %p283 = por %p281, %p282
    %p285 = scmp.ne.s32.totalorder %s270, %s284
    %p286 = scmp.eq.s32.totalorder %s29, 0
    %p287 = por %p285, %p286
    %s289 = sadd.s32 %s288, 1
    %p292 = scmp.eq.s32.totalorder %s23, 1
    %p293 = scmp.ne.s32.totalorder %s288, %s290
    %p294 = scmp.eq.s32.totalorder %s23, 0
    %p295 = por %p293, %p294
    %p296 = scmp.ne.s32.totalorder %s288, %s290
    %p297 = scmp.eq.s32.totalorder %s28, 1
    %p298 = por %p296, %p297
    %p299 = scmp.ne.s32.totalorder %s290, %s291
    %p300 = scmp.eq.s32.totalorder %s28, 0
    %p301 = por %p299, %p300
    %p302 = scmp.ne.s32.totalorder %s290, %s291
    %p303 = scmp.eq.s32.totalorder %s29, 1
    %p304 = por %p302, %p303
    %p306 = scmp.ne.s32.totalorder %s291, %s305
    %p307 = scmp.eq.s32.totalorder %s29, 0
    %p308 = por %p306, %p307
    %s310 = sadd.s32 %s309, 1
    %p313 = scmp.eq.s32.totalorder %s23, 1
    %p314 = scmp.ne.s32.totalorder %s309, %s311
    %p315 = scmp.eq.s32.totalorder %s23, 0
    %p316 = por %p314, %p315
    %p317 = scmp.ne.s32.totalorder %s309, %s311
    %p318 = scmp.eq.s32.totalorder %s28, 1
    %p319 = por %p317, %p318
    %p320 = scmp.ne.s32.totalorder %s311, %s312
    %p321 = scmp.eq.s32.totalorder %s28, 0
    %p322 = por %p320, %p321
    %p323 = scmp.ne.s32.totalorder %s311, %s312
    %p324 = scmp.eq.s32.totalorder %s29, 1
    %p325 = por %p323, %p324
    %p327 = scmp.ne.s32.totalorder %s312, %s326
    %p328 = scmp.eq.s32.totalorder %s29, 0
    %p329 = por %p327, %p328
    %s331 = sadd.s32 %s330, 1
    %p334 = scmp.eq.s32.totalorder %s23, 1
    %p335 = scmp.ne.s32.totalorder %s330, %s332
    %p336 = scmp.eq.s32.totalorder %s23, 0
    %p337 = por %p335, %p336
    %p338 = scmp.ne.s32.totalorder %s330, %s332
    %p339 = scmp.eq.s32.totalorder %s28, 1
    %p340 = por %p338, %p339
    %p341 = scmp.ne.s32.totalorder %s332, %s333
    %p342 = scmp.eq.s32.totalorder %s28, 0
    %p343 = por %p341, %p342
    %p344 = scmp.ne.s32.totalorder %s332, %s333
    %p345 = scmp.eq.s32.totalorder %s29, 1
    %p346 = por %p344, %p345
    %p348 = scmp.ne.s32.totalorder %s333, %s347
    %p349 = scmp.eq.s32.totalorder %s29, 0
    %p350 = por %p348, %p349
    %s352 = sadd.s32 %s351, 1
    %p355 = scmp.eq.s32.totalorder %s23, 1
    %p356 = scmp.ne.s32.totalorder %s351, %s353
    %p357 = scmp.eq.s32.totalorder %s23, 0
    %p358 = por %p356, %p357
    %p359 = scmp.ne.s32.totalorder %s351, %s353
    %p360 = scmp.eq.s32.totalorder %s28, 1
    %p361 = por %p359, %p360
    %p362 = scmp.ne.s32.totalorder %s353, %s354
    %p363 = scmp.eq.s32.totalorder %s28, 0
    %p364 = por %p362, %p363
    %p365 = scmp.ne.s32.totalorder %s353, %s354
    %p366 = scmp.eq.s32.totalorder %s29, 1
    %p367 = por %p365, %p366
    %p369 = scmp.ne.s32.totalorder %s354, %s368
    %p370 = scmp.eq.s32.totalorder %s29, 0
    %p371 = por %p369, %p370
    %s373 = sadd.s32 %s372, 1
    %p376 = scmp.eq.s32.totalorder %s23, 1
    %p377 = scmp.ne.s32.totalorder %s372, %s374
    %p378 = scmp.eq.s32.totalorder %s23, 0
    %p379 = por %p377, %p378
    %p380 = scmp.ne.s32.totalorder %s372, %s374
    %p381 = scmp.eq.s32.totalorder %s28, 1
    %p382 = por %p380, %p381
    %p383 = scmp.ne.s32.totalorder %s374, %s375
    %p384 = scmp.eq.s32.totalorder %s28, 0
    %p385 = por %p383, %p384
    %p386 = scmp.ne.s32.totalorder %s374, %s375
    %p387 = scmp.eq.s32.totalorder %s29, 1
    %p388 = por %p386, %p387
    %p390 = scmp.ne.s32.totalorder %s375, %s389
    %p391 = scmp.eq.s32.totalorder %s29, 0
    %p392 = por %p390, %p391
    %s393 = ssub.s32 %s30, %s42
    %s394 = ssub.s32 %s31, %s38
    %s395 = sor.u32 %s393, %s394
    %p396 = scmp.eq.s32.totalorder %s395, 0
    %s398 = sadd.s32 %s397, 1
    %s399 = scalar_select %p396, %s397, %s398
    %p402 = pneg %p396
    %p403 = scmp.eq.s32.totalorder %s23, 1
    %p404 = por %p402, %p403
    %p405 = scmp.ne.s32.totalorder %s397, %s400
    %p406 = scmp.eq.s32.totalorder %s23, 0
    %p407 = por %p405, %p406
    %p408 = scmp.ne.s32.totalorder %s397, %s400
    %p409 = scmp.eq.s32.totalorder %s28, 1
    %p410 = por %p408, %p409
    %p411 = scmp.ne.s32.totalorder %s400, %s401
    %p412 = scmp.eq.s32.totalorder %s28, 0
    %p413 = por %p411, %p412
    %p414 = scmp.ne.s32.totalorder %s400, %s401
    %p415 = scmp.eq.s32.totalorder %s29, 1
    %p416 = por %p414, %p415
    %p418 = scmp.ne.s32.totalorder %s401, %s417
    %p419 = scmp.eq.s32.totalorder %s29, 0
    %p420 = por %p418, %p419
    %s421 = ssub.s32 %s30, %s42
    %s422 = ssub.s32 %s31, %s38
    %s423 = sor.u32 %s421, %s422
    %p424 = scmp.eq.s32.totalorder %s423, 0
    %s426 = sadd.s32 %s425, 1
    %s427 = scalar_select %p424, %s425, %s426
    %p430 = pneg %p424
    %p431 = scmp.eq.s32.totalorder %s23, 1
    %p432 = por %p430, %p431
    %p433 = scmp.ne.s32.totalorder %s425, %s428
    %p434 = scmp.eq.s32.totalorder %s23, 0
    %p435 = por %p433, %p434
    %p436 = scmp.ne.s32.totalorder %s425, %s428
    %p437 = scmp.eq.s32.totalorder %s28, 1
    %p438 = por %p436, %p437
    %p439 = scmp.ne.s32.totalorder %s428, %s429
    %p440 = scmp.eq.s32.totalorder %s28, 0
    %p441 = por %p439, %p440
    %p442 = scmp.ne.s32.totalorder %s428, %s429
    %p443 = scmp.eq.s32.totalorder %s29, 1
    %p444 = por %p442, %p443
    %p446 = scmp.ne.s32.totalorder %s429, %s445
    %p447 = scmp.eq.s32.totalorder %s29, 0
    %p448 = por %p446, %p447
    %p449 = scmp.le.s32.totalorder 1, %s23
    %p450 = scmp.lt.s32.totalorder %s23, 3
    %p451 = pnand %p449, %p450
    %p452 = pneg %p451
    // Predicated region
    $region9: #{_transfer_forward.1} parent=5 // pred_check
      _
    $region10: #{_transfer_forward.1} parent=5 // pred_check_branch
      %454 = sbr.rel (%p451) target = $region12
    $region11: #{_transfer_forward.1} parent=5 // pred_region
      %s455 = ssub.s32 %s23, 1
      // Predicated region
      $region13: #{_transfer_forward.1} parent=11 // pred_check
        %p456 = pneg %p196
      $region14: #{_transfer_forward.1} parent=11 // pred_check_branch
        %458 = sbr.rel (%p456) target = $region16
      $region15: #{_transfer_forward.1} parent=11 // pred_region
        _
      $region16: #{_transfer_forward.1} parent=11 // pred_fallthru
        _
      // Predicated region
      $region17: #{_transfer_forward.1} parent=11 // pred_check
        %p459 = pneg %p217
      $region18: #{_transfer_forward.1} parent=11 // pred_check_branch
        %461 = sbr.rel (%p459) target = $region20
      $region19: #{_transfer_forward.1} parent=11 // pred_region
        _
      $region20: #{_transfer_forward.1} parent=11 // pred_fallthru
        _
      // Predicated region
      $region21: #{_transfer_forward.1} parent=11 // pred_check
        %p462 = pneg %p238
      $region22: #{_transfer_forward.1} parent=11 // pred_check_branch
        %464 = sbr.rel (%p462) target = $region24
      $region23: #{_transfer_forward.1} parent=11 // pred_region
        _
      $region24: #{_transfer_forward.1} parent=11 // pred_fallthru
        _
      // Predicated region
      $region25: #{_transfer_forward.1} parent=11 // pred_check
        %p465 = pneg %p259
      $region26: #{_transfer_forward.1} parent=11 // pred_check_branch
        %467 = sbr.rel (%p465) target = $region28
      $region27: #{_transfer_forward.1} parent=11 // pred_region
        _
      $region28: #{_transfer_forward.1} parent=11 // pred_fallthru
        _
      // Predicated region
      $region29: #{_transfer_forward.1} parent=11 // pred_check
        %p468 = pneg %p280
      $region30: #{_transfer_forward.1} parent=11 // pred_check_branch
        %470 = sbr.rel (%p468) target = $region32
      $region31: #{_transfer_forward.1} parent=11 // pred_region
        _
      $region32: #{_transfer_forward.1} parent=11 // pred_fallthru
        _
      // Predicated region
      $region33: #{_transfer_forward.1} parent=11 // pred_check
        %p471 = pneg %p301
      $region34: #{_transfer_forward.1} parent=11 // pred_check_branch
        %473 = sbr.rel (%p471) target = $region36
      $region35: #{_transfer_forward.1} parent=11 // pred_region
        _
      $region36: #{_transfer_forward.1} parent=11 // pred_fallthru
        _
      // Predicated region
      $region37: #{_transfer_forward.1} parent=11 // pred_check
        %p474 = pneg %p322
      $region38: #{_transfer_forward.1} parent=11 // pred_check_branch
        %476 = sbr.rel (%p474) target = $region40
      $region39: #{_transfer_forward.1} parent=11 // pred_region
        _
      $region40: #{_transfer_forward.1} parent=11 // pred_fallthru
        _
      // Predicated region
      $region41: #{_transfer_forward.1} parent=11 // pred_check
        %p477 = pneg %p343
      $region42: #{_transfer_forward.1} parent=11 // pred_check_branch
        %479 = sbr.rel (%p477) target = $region44
      $region43: #{_transfer_forward.1} parent=11 // pred_region
        _
      $region44: #{_transfer_forward.1} parent=11 // pred_fallthru
        _
      // Predicated region
      $region45: #{_transfer_forward.1} parent=11 // pred_check
        %p480 = pneg %p364
      $region46: #{_transfer_forward.1} parent=11 // pred_check_branch
        %482 = sbr.rel (%p480) target = $region48
      $region47: #{_transfer_forward.1} parent=11 // pred_region
        _
      $region48: #{_transfer_forward.1} parent=11 // pred_fallthru
        _
      // Predicated region
      $region49: #{_transfer_forward.1} parent=11 // pred_check
        %p483 = pneg %p385
      $region50: #{_transfer_forward.1} parent=11 // pred_check_branch
        %485 = sbr.rel (%p483) target = $region52
      $region51: #{_transfer_forward.1} parent=11 // pred_region
        _
      $region52: #{_transfer_forward.1} parent=11 // pred_fallthru
        _
    $region12: #{_transfer_forward.1} parent=5 // pred_fallthru
      _
    %p486 = scmp.lt.s32.totalorder %s23, 2
    // Predicated region
    $region53: #{_transfer_forward.1} parent=5 // pred_check
      %p487 = pneg %p486
    $region54: #{_transfer_forward.1} parent=5 // pred_check_branch
      %489 = sbr.rel (%p487) target = $region56
    $region55: #{_transfer_forward.1} parent=5 // pred_region
      // Predicated region
      $region57: #{_transfer_forward.1} parent=55 // pred_check
        %p490 = pneg %p57
      $region58: #{_transfer_forward.1} parent=55 // pred_check_branch
        %492 = sbr.rel (%p490) target = $region60
      $region59: #{_transfer_forward.1} parent=55 // pred_region
        %s493 = smul.u32 2, %s31
        %p494 = scmp.lt.s32.totalorder %s30, 1
        %s495 = scalar_select %p494, %s30, 1
        %p496 = scmp.lt.s32.totalorder %s493, 1
        %s497 = scalar_select %p496, %s493, 1
        %s498 = smul.addr %s495, 2
        %s499 = sadd.s32 %s497, %s498
        %s500 = smul.addr %s499, 4
        %s501 = scalar_lea.vmem %s0, %s500
        %s502 = smul.u32 2, %s31
      $region60: #{_transfer_forward.1} parent=55 // pred_fallthru
        _
      // Predicated region
      $region61: #{_transfer_forward.1} parent=55 // pred_check
        %p503 = pneg %p85
      $region62: #{_transfer_forward.1} parent=55 // pred_check_branch
        %505 = sbr.rel (%p503) target = $region64
      $region63: #{_transfer_forward.1} parent=55 // pred_region
        %s506 = smul.u32 2, %s31
        %p507 = scmp.lt.s32.totalorder %s30, 1
        %s508 = scalar_select %p507, %s30, 1
        %p509 = scmp.lt.s32.totalorder %s506, 1
        %s510 = scalar_select %p509, %s506, 1
        %s511 = smul.addr %s508, 6
        %s512 = sadd.s32 %s510, %s511
        %s513 = smul.addr %s512, 4
        %s514 = scalar_lea.vmem %s1, %s513
        %s515 = smul.u32 2, %s31
      $region64: #{_transfer_forward.1} parent=55 // pred_fallthru
        _
      // Predicated region
      $region65: #{_transfer_forward.1} parent=55 // pred_check
        %p516 = pneg %p113
      $region66: #{_transfer_forward.1} parent=55 // pred_check_branch
        %518 = sbr.rel (%p516) target = $region68
      $region67: #{_transfer_forward.1} parent=55 // pred_region
        %s519 = smul.u32 2, %s31
        %p520 = scmp.lt.s32.totalorder %s30, 1
        %s521 = scalar_select %p520, %s30, 1
        %p522 = scmp.lt.s32.totalorder %s519, 1
        %s523 = scalar_select %p522, %s519, 1
        %s524 = smul.addr %s521, 6
        %s525 = sadd.s32 %s523, %s524
        %s526 = smul.addr %s525, 4
        %s527 = scalar_lea.vmem %s2, %s526
        %s528 = smul.u32 2, %s31
      $region68: #{_transfer_forward.1} parent=55 // pred_fallthru
        _
      // Predicated region
      $region69: #{_transfer_forward.1} parent=55 // pred_check
        %p529 = pneg %p141
      $region70: #{_transfer_forward.1} parent=55 // pred_check_branch
        %531 = sbr.rel (%p529) target = $region72
      $region71: #{_transfer_forward.1} parent=55 // pred_region
        %s532 = smul.u32 2, %s31
        %p533 = scmp.lt.s32.totalorder %s30, 1
        %s534 = scalar_select %p533, %s30, 1
        %p535 = scmp.lt.s32.totalorder %s532, 1
        %s536 = scalar_select %p535, %s532, 1
        %s537 = smul.addr %s534, 4
        %s538 = sadd.s32 %s536, %s537
        %s539 = smul.addr %s538, 4
        %s540 = scalar_lea.vmem %s3, %s539
        %s541 = smul.u32 2, %s31
      $region72: #{_transfer_forward.1} parent=55 // pred_fallthru
        _
      // Predicated region
      $region73: #{_transfer_forward.1} parent=55 // pred_check
        %p542 = pneg %p169
      $region74: #{_transfer_forward.1} parent=55 // pred_check_branch
        %544 = sbr.rel (%p542) target = $region76
      $region75: #{_transfer_forward.1} parent=55 // pred_region
        %s545 = smul.u32 2, %s31
        %p546 = scmp.lt.s32.totalorder %s30, 1
        %s547 = scalar_select %p546, %s30, 1
        %p548 = scmp.lt.s32.totalorder %s545, 1
        %s549 = scalar_select %p548, %s545, 1
        %s550 = smul.addr %s547, 4
        %s551 = sadd.s32 %s549, %s550
        %s552 = smul.addr %s551, 4
        %s553 = scalar_lea.vmem %s4, %s552
        %s554 = smul.u32 2, %s31
      $region76: #{_transfer_forward.1} parent=55 // pred_fallthru
        _
    $region56: #{_transfer_forward.1} parent=5 // pred_fallthru
      _
    %p555 = scmp.le.s32.totalorder 1, %s23
    %p556 = scmp.lt.s32.totalorder %s23, 3
    %p557 = pnand %p555, %p556
    %p558 = pneg %p557
    // Predicated region
    $region77: #{_transfer_forward.1} parent=5 // pred_check
      _
    $region78: #{_transfer_forward.1} parent=5 // pred_check_branch
      %560 = sbr.rel (%p557) target = $region80
    $region79: #{_transfer_forward.1} parent=5 // pred_region
      %s561 = ssub.s32 %s23, 1
      %s562 = smul.u32 2, %s33
      %p563 = scmp.lt.s32.totalorder %s32, 1
      %s564 = scalar_select %p563, %s32, 1
      %p565 = scmp.lt.s32.totalorder %s562, 1
      %s566 = scalar_select %p565, %s562, 1
      %s567 = smul.addr %s564, 2
      %s568 = sadd.s32 %s566, %s567
      %s569 = smul.addr %s568, 4
      %s570 = scalar_lea.vmem %s0, %s569
      %p571 = pneg %p63
      %p572 = pneg %p60
      %s573 = smul.u32 2, %s33
      %p574 = scmp.lt.s32.totalorder %s32, 1
      %s575 = scalar_select %p574, %s32, 1
      %p576 = scmp.lt.s32.totalorder %s573, 1
      %s577 = scalar_select %p576, %s573, 1
      %s578 = smul.addr %s575, 6
      %s579 = sadd.s32 %s577, %s578
      %s580 = smul.addr %s579, 4
      %s581 = scalar_lea.vmem %s1, %s580
      %p582 = pneg %p91
      %p583 = pneg %p88
      %s584 = smul.u32 2, %s33
      %p585 = scmp.lt.s32.totalorder %s32, 1
      %s586 = scalar_select %p585, %s32, 1
      %p587 = scmp.lt.s32.totalorder %s584, 1
      %s588 = scalar_select %p587, %s584, 1
      %s589 = smul.addr %s586, 6
      %s590 = sadd.s32 %s588, %s589
      %s591 = smul.addr %s590, 4
      %s592 = scalar_lea.vmem %s2, %s591
      %p593 = pneg %p119
      %p594 = pneg %p116
      %s595 = smul.u32 2, %s33
      %p596 = scmp.lt.s32.totalorder %s32, 1
      %s597 = scalar_select %p596, %s32, 1
      %p598 = scmp.lt.s32.totalorder %s595, 1
      %s599 = scalar_select %p598, %s595, 1
      %s600 = smul.addr %s597, 4
      %s601 = sadd.s32 %s599, %s600
      %s602 = smul.addr %s601, 4
      %s603 = scalar_lea.vmem %s3, %s602
      %p604 = pneg %p147
      %p605 = pneg %p144
      %s606 = smul.u32 2, %s33
      %p607 = scmp.lt.s32.totalorder %s32, 1
      %s608 = scalar_select %p607, %s32, 1
      %p609 = scmp.lt.s32.totalorder %s606, 1
      %s610 = scalar_select %p609, %s606, 1
      %s611 = smul.addr %s608, 4
      %s612 = sadd.s32 %s610, %s611
      %s613 = smul.addr %s612, 4
      %s614 = scalar_lea.vmem %s4, %s613
      %p615 = pneg %p175
      %p616 = pneg %p172
      %p617 = pneg %p196
      %p618 = pneg %p193
      %p619 = pneg %p217
      %p620 = pneg %p214
      %p621 = pneg %p238
      %p622 = pneg %p235
      %p623 = pneg %p259
      %p624 = pneg %p256
      %p625 = pneg %p280
      %p626 = pneg %p277
      %p627 = pneg %p301
      %p628 = pneg %p298
      %p629 = pneg %p322
      %p630 = pneg %p319
      %p631 = pneg %p343
      %p632 = pneg %p340
      %p633 = pneg %p364
      %p634 = pneg %p361
      %p635 = pneg %p385
      %p636 = pneg %p382
      %p637 = pneg %p413
      %p638 = pneg %p410
      %s639 = smul.u32 2, %s33
      %p640 = scmp.lt.s32.totalorder %s32, 1
      %s641 = scalar_select %p640, %s32, 1
      %p642 = scmp.lt.s32.totalorder %s639, 1
      %s643 = scalar_select %p642, %s639, 1
      %s644 = smul.addr %s641, 2
      %s645 = sadd.s32 %s643, %s644
      %s646 = smul.addr %s645, 2
      %s647 = scalar_lea.vmem %s15, %s646
      %p648 = pneg %p441
      %p649 = pneg %p438
      %s650 = smul.u32 2, %s33
      %p651 = scmp.lt.s32.totalorder %s32, 1
      %s652 = scalar_select %p651, %s32, 1
      %p653 = scmp.lt.s32.totalorder %s650, 1
      %s654 = scalar_select %p653, %s650, 1
      %s655 = smul.addr %s652, 4
      %s656 = sadd.s32 %s654, %s655
      %s657 = smul.addr %s656, 4
      %s658 = scalar_lea.vmem %s16, %s657
      %s659 = smul.u32 2, %s33
      %p660 = scmp.lt.s32.totalorder %s32, 1
      %s661 = scalar_select %p660, %s32, 1
      %p662 = scmp.lt.s32.totalorder %s659, 1
      %s663 = scalar_select %p662, %s659, 1
      %s664 = smul.addr %s661, 2
      %s665 = sadd.s32 %s663, %s664
      %s666 = smul.addr %s665, 4
      %s667 = scalar_lea.vmem %s0, %s666
      %s668 = smul.u32 2, %s33
      %s669 = smul.u32 2, %s33
      %p670 = scmp.lt.s32.totalorder %s32, 1
      %s671 = scalar_select %p670, %s32, 1
      %p672 = scmp.lt.s32.totalorder %s669, 1
      %s673 = scalar_select %p672, %s669, 1
      %s674 = smul.addr %s671, 6
      %s675 = sadd.s32 %s673, %s674
      %s676 = smul.addr %s675, 4
      %s677 = scalar_lea.vmem %s1, %s676
      %s678 = smul.u32 2, %s33
      %s679 = smul.u32 2, %s33
      %p680 = scmp.lt.s32.totalorder %s32, 1
      %s681 = scalar_select %p680, %s32, 1
      %p682 = scmp.lt.s32.totalorder %s679, 1
      %s683 = scalar_select %p682, %s679, 1
      %s684 = smul.addr %s681, 6
      %s685 = sadd.s32 %s683, %s684
      %s686 = smul.addr %s685, 4
      %s687 = scalar_lea.vmem %s2, %s686
      %s688 = smul.u32 2, %s33
      %s689 = smul.u32 2, %s33
      %p690 = scmp.lt.s32.totalorder %s32, 1
      %s691 = scalar_select %p690, %s32, 1
      %p692 = scmp.lt.s32.totalorder %s689, 1
      %s693 = scalar_select %p692, %s689, 1
      %s694 = smul.addr %s691, 4
      %s695 = sadd.s32 %s693, %s694
      %s696 = smul.addr %s695, 4
      %s697 = scalar_lea.vmem %s3, %s696
      %s698 = smul.u32 2, %s33
      %s699 = smul.u32 2, %s33
      %p700 = scmp.lt.s32.totalorder %s32, 1
      %s701 = scalar_select %p700, %s32, 1
      %p702 = scmp.lt.s32.totalorder %s699, 1
      %s703 = scalar_select %p702, %s699, 1
      %s704 = smul.addr %s701, 4
      %s705 = sadd.s32 %s703, %s704
      %s706 = smul.addr %s705, 4
      %s707 = scalar_lea.vmem %s4, %s706
      %s708 = smul.u32 2, %s33
      %s709 = smul.u32 2, %s33
      %p710 = scmp.lt.s32.totalorder %s32, 1
      %s711 = scalar_select %p710, %s32, 1
      %p712 = scmp.lt.s32.totalorder %s709, 1
      %s713 = scalar_select %p712, %s709, 1
      %s714 = smul.addr %s711, 2
      %s715 = sadd.s32 %s713, %s714
      %s716 = smul.addr %s715, 2
      %s717 = scalar_lea.vmem %s15, %s716
      %s718 = smul.u32 2, %s33
      %s719 = smul.u32 2, %s33
      %p720 = scmp.lt.s32.totalorder %s32, 1
      %s721 = scalar_select %p720, %s32, 1
      %p722 = scmp.lt.s32.totalorder %s719, 1
      %s723 = scalar_select %p722, %s719, 1
      %s724 = smul.addr %s721, 4
      %s725 = sadd.s32 %s723, %s724
      %s726 = smul.addr %s725, 4
      %s727 = scalar_lea.vmem %s16, %s726
      %s728 = smul.u32 2, %s33
      %v730 = vld [vmem:[%s5] sm:$0xf]
      %v731 = vld [vmem:[%s5 + $0x4] sm:$0xf]
      %v732 = vld [vmem:[%s5 + $0x8] sm:$0xf]
      %v733 = vld [vmem:[%s5 + $0xc] sm:$0xf]
      %v734 = vld [vmem:[%s667] sm:$0x77]
      %v736 = vcombine.high %v734, %v734
      %v738 = vpack.c.bf16 %v734, %v734
      %v739 = vpack.c.bf16 %v736, %v736
      %v740 = vld [vmem:[%s6] sm:$0xf]
      %v741 = vld [vmem:[%s6 + $0x4] sm:$0xf]
      %v742 = vld [vmem:[%s6 + $0x8] sm:$0xf]
      %v743 = vld [vmem:[%s6 + $0xc] sm:$0xf]
      %v744 = vld [vmem:[%s677] sm:$0xff]
      %v745 = vld [vmem:[%s677 + $0x8] sm:$0xff]
      %v746 = vld [vmem:[%s677 + $0x10] sm:$0x11]
      %v751 = vunpack.c.l.b16 %v740
      %v752 = vunpack.c.l.b16 %v741
      %v753 = vunpack.c.l.b16 %v742
      %v754 = vunpack.c.l.b16 %v743
      %v755 = vpack.c.b16 %v752, %v751
      %v756 = vpack.c.b16 %v754, %v753
      %v760 = vunpack.c.l.b16 %v744
      %v761 = vunpack.c.h.b16 %v744
      %v762 = vunpack.c.l.b16 %v745
      %v763 = vunpack.c.h.b16 %v745
      %v764 = vunpack.c.l.b16 %v746
      %v765 = vunpack.c.h.b16 %v746
      %v766 = vpack.c.b16 %v762, %v760
      %v767 = vpack.c.b16 %v763, %v761
      %v768 = vpack.c.b16 %v764, %v764
      %v769 = vpack.c.b16 %v765, %v765
      %vm772 = vcmask 146432
      %v774 = vsel %vm772, %v755, 0
      %v777 = vsel %vm772, %v756, 0
      %vm779 = vcmask 1040384
      %v781 = vsel %vm779, %v768, 0
      %v784 = vsel %vm779, %v769, 0
      %786 = vmatprep.subr.bf16.mxu0 %v767
      %787 = vmatpush1.bf16.msra.mxu0 %v766
      %788 = vmatprep.subr.bf16.mxu0 %v784
      %789 = vmatpush1.bf16.msra.mxu0 %v781
      %790 = vmatprep.subr.bf16.mxu0 0
      %791 = vmatpush1.bf16.msra.mxu0 0
      %792 = vmatprep.subr.bf16.mxu0 0
      %793 = vmatpush1.bf16.msra.mxu0 0
      %794 = vmatprep.subr.bf16.mxu0 0
      %795 = vmatpush1.bf16.msra.mxu0 0
      %796 = vmatprep.subr.bf16.mxu0 0
      %797 = vmatpush1.bf16.msra.mxu0 0
      %798 = vmatprep.subr.bf16.mxu0 0
      %799 = vmatpush1.bf16.msra.mxu0 0
      %800 = vmatprep.subr.bf16.mxu0 0
      %801 = vmatpush1.bf16.msra.mxu0 0
      %802 = vmatprep.subr.bf16.mxu0 0
      %803 = vmatpush1.bf16.msra.mxu0 0
      %804 = vmatprep.subr.bf16.mxu0 0
      %805 = vmatpush1.bf16.msra.mxu0 0
      %806 = vmatprep.subr.bf16.mxu0 0
      %807 = vmatpush1.bf16.msra.mxu0 0
      %808 = vmatprep.subr.bf16.mxu0 0
      %809 = vmatpush1.bf16.msra.mxu0 0
      %810 = vmatprep.subr.bf16.mxu0 0
      %811 = vmatpush1.bf16.msra.mxu0 0
      %812 = vmatprep.subr.bf16.mxu0 0
      %813 = vmatpush1.bf16.msra.mxu0 0
      %814 = vmatprep.subr.bf16.mxu0 0
      %815 = vmatpush1.bf16.msra.mxu0 0
      %816 = vmatprep.subr.bf16.mxu0 0
      %817 = vmatpush1.bf16.msra.mxu0 0
      %818 = vmatprep.mubr.bf16.mxu0 0
      %819 = vmatmul.mubr.bf16.gmra.mrb[0].mxu0 %v774
      %v820 = vpop.f32.mrb[0].mxu0
      %v821 = vadd.f32 0.0, %v820
      %v822 = vpop.f32.mrb[0].mxu0
      %v823 = vadd.f32 0.0, %v822
      %v824 = vpop.f32.mrb[0].mxu0
      %v825 = vadd.f32 0.0, %v824
      %v826 = vpop.f32.mrb[0].mxu0
      %v827 = vadd.f32 0.0, %v826
      %828 = vmatprep.mubr.bf16.mxu0 0
      %829 = vmatmul.mubr.bf16.gmra.mrb[0].mxu0 %v777
      %v830 = vpop.f32.mrb[0].mxu0
      %v831 = vadd.f32 0.0, %v830
      %v832 = vpop.f32.mrb[0].mxu0
      %v833 = vadd.f32 0.0, %v832
      %v834 = vpop.f32.mrb[0].mxu0
      %v835 = vadd.f32 0.0, %v834
      %v836 = vpop.f32.mrb[0].mxu0
      %v837 = vadd.f32 0.0, %v836
      %838 = vdwg.mxu0
      %v843 = vunpack.c.l.b16 %v730
      %v844 = vunpack.c.l.b16 %v731
      %v845 = vunpack.c.l.b16 %v732
      %v846 = vunpack.c.l.b16 %v733
      %v847 = vpack.c.b16 %v844, %v843
      %v848 = vpack.c.b16 %v846, %v845
      %vm849 = vcmask 23552
      %v851 = vsel %vm849, %v847, 0
      %v854 = vsel %vm849, %v848, 0
      %vm856 = vcmask 1041408
      %v857 = vsel %vm779, 4294967295, 65535
      %v858 = vsel %vm856, %v857, 0
      %v860 = vand.u32 %v738, %v858
      %v863 = vand.u32 %v739, %v858
      %865 = vmatprep.subr.bf16.mxu0 %v863
      %866 = vmatpush1.bf16.msra.mxu0 %v860
      %867 = vmatprep.subr.bf16.mxu0 0
      %868 = vmatpush1.bf16.msra.mxu0 0
      %869 = vmatprep.subr.bf16.mxu0 0
      %870 = vmatpush1.bf16.msra.mxu0 0
      %871 = vmatprep.subr.bf16.mxu0 0
      %872 = vmatpush1.bf16.msra.mxu0 0
      %873 = vmatprep.subr.bf16.mxu0 0
      %874 = vmatpush1.bf16.msra.mxu0 0
      %875 = vmatprep.subr.bf16.mxu0 0
      %876 = vmatpush1.bf16.msra.mxu0 0
      %877 = vmatprep.subr.bf16.mxu0 0
      %878 = vmatpush1.bf16.msra.mxu0 0
      %879 = vmatprep.subr.bf16.mxu0 0
      %880 = vmatpush1.bf16.msra.mxu0 0
      %881 = vmatprep.subr.bf16.mxu0 0
      %882 = vmatpush1.bf16.msra.mxu0 0
      %883 = vmatprep.subr.bf16.mxu0 0
      %884 = vmatpush1.bf16.msra.mxu0 0
      %885 = vmatprep.subr.bf16.mxu0 0
      %886 = vmatpush1.bf16.msra.mxu0 0
      %887 = vmatprep.subr.bf16.mxu0 0
      %888 = vmatpush1.bf16.msra.mxu0 0
      %889 = vmatprep.subr.bf16.mxu0 0
      %890 = vmatpush1.bf16.msra.mxu0 0
      %891 = vmatprep.subr.bf16.mxu0 0
      %892 = vmatpush1.bf16.msra.mxu0 0
      %893 = vmatprep.subr.bf16.mxu0 0
      %894 = vmatpush1.bf16.msra.mxu0 0
      %895 = vmatprep.subr.bf16.mxu0 0
      %896 = vmatpush1.bf16.msra.mxu0 0
      %897 = vmatprep.mubr.bf16.mxu0 0
      %898 = vmatmul.mubr.bf16.gmra.mrb[0].mxu0 %v851
      %v899 = vpop.f32.mrb[0].mxu0
      %v900 = vadd.f32 %v821, %v899
      %v901 = vpop.f32.mrb[0].mxu0
      %v902 = vadd.f32 %v823, %v901
      %v903 = vpop.f32.mrb[0].mxu0
      %v904 = vadd.f32 %v825, %v903
      %v905 = vpop.f32.mrb[0].mxu0
      %v906 = vadd.f32 %v827, %v905
      %907 = vmatprep.mubr.bf16.mxu0 0
      %908 = vmatmul.mubr.bf16.gmra.mrb[0].mxu0 %v854
      %v909 = vpop.f32.mrb[0].mxu0
      %v910 = vadd.f32 %v831, %v909
      %v911 = vpop.f32.mrb[0].mxu0
      %v912 = vadd.f32 %v833, %v911
      %v913 = vpop.f32.mrb[0].mxu0
      %v914 = vadd.f32 %v835, %v913
      %v915 = vpop.f32.mrb[0].mxu0
      %v916 = vadd.f32 %v837, %v915
      %917 = vdwg.mxu0
      %v918 = vld [vmem:[%s7] sm:$0xf]
      %v919 = vld [vmem:[%s7 + $0x4] sm:$0xf]
      %v920 = vld [vmem:[%s7 + $0x8] sm:$0xf]
      %v921 = vld [vmem:[%s7 + $0xc] sm:$0xf]
      %v922 = vld [vmem:[%s687] sm:$0xff]
      %v923 = vld [vmem:[%s687 + $0x8] sm:$0xff]
      %v924 = vld [vmem:[%s687 + $0x10] sm:$0x11]
      %v929 = vunpack.c.l.b16 %v918
      %v930 = vunpack.c.l.b16 %v919
      %v931 = vunpack.c.l.b16 %v920
      %v932 = vunpack.c.l.b16 %v921
      %v933 = vpack.c.b16 %v930, %v929
      %v934 = vpack.c.b16 %v932, %v931
      %v938 = vunpack.c.l.b16 %v922
      %v939 = vunpack.c.h.b16 %v922
      %v940 = vunpack.c.l.b16 %v923
      %v941 = vunpack.c.h.b16 %v923
      %v942 = vunpack.c.l.b16 %v924
      %v943 = vunpack.c.h.b16 %v924
      %v944 = vpack.c.b16 %v940, %v938
      %v945 = vpack.c.b16 %v941, %v939
      %v946 = vpack.c.b16 %v942, %v942
      %v947 = vpack.c.b16 %v943, %v943
      %v951 = vsel %vm772, %v933, 0
      %v954 = vsel %vm772, %v934, 0
      %v957 = vsel %vm779, %v946, 0
      %v960 = vsel %vm779, %v947, 0
      %962 = vmatprep.subr.bf16.mxu0 %v945
      %963 = vmatpush1.bf16.msra.mxu0 %v944
      %964 = vmatprep.subr.bf16.mxu0 %v960
      %965 = vmatpush1.bf16.msra.mxu0 %v957
      %966 = vmatprep.subr.bf16.mxu0 0
      %967 = vmatpush1.bf16.msra.mxu0 0
      %968 = vmatprep.subr.bf16.mxu0 0
      %969 = vmatpush1.bf16.msra.mxu0 0
      %970 = vmatprep.subr.bf16.mxu0 0
      %971 = vmatpush1.bf16.msra.mxu0 0
      %972 = vmatprep.subr.bf16.mxu0 0
      %973 = vmatpush1.bf16.msra.mxu0 0
      %974 = vmatprep.subr.bf16.mxu0 0
      %975 = vmatpush1.bf16.msra.mxu0 0
      %976 = vmatprep.subr.bf16.mxu0 0
      %977 = vmatpush1.bf16.msra.mxu0 0
      %978 = vmatprep.subr.bf16.mxu0 0
      %979 = vmatpush1.bf16.msra.mxu0 0
      %980 = vmatprep.subr.bf16.mxu0 0
      %981 = vmatpush1.bf16.msra.mxu0 0
      %982 = vmatprep.subr.bf16.mxu0 0
      %983 = vmatpush1.bf16.msra.mxu0 0
      %984 = vmatprep.subr.bf16.mxu0 0
      %985 = vmatpush1.bf16.msra.mxu0 0
      %986 = vmatprep.subr.bf16.mxu0 0
      %987 = vmatpush1.bf16.msra.mxu0 0
      %988 = vmatprep.subr.bf16.mxu0 0
      %989 = vmatpush1.bf16.msra.mxu0 0
      %990 = vmatprep.subr.bf16.mxu0 0
      %991 = vmatpush1.bf16.msra.mxu0 0
      %992 = vmatprep.subr.bf16.mxu0 0
      %993 = vmatpush1.bf16.msra.mxu0 0
      %994 = vmatprep.mubr.bf16.mxu0 0
      %995 = vmatmul.mubr.bf16.gmra.mrb[0].mxu0 %v951
      %v996 = vpop.f32.mrb[0].mxu0
      %v997 = vadd.f32 0.0, %v996
      %v998 = vpop.f32.mrb[0].mxu0
      %v999 = vadd.f32 0.0, %v998
      %v1000 = vpop.f32.mrb[0].mxu0
      %v1001 = vadd.f32 0.0, %v1000
      %v1002 = vpop.f32.mrb[0].mxu0
      %v1003 = vadd.f32 0.0, %v1002
      %1004 = vmatprep.mubr.bf16.mxu0 0
      %1005 = vmatmul.mubr.bf16.gmra.mrb[0].mxu0 %v954
      %v1006 = vpop.f32.mrb[0].mxu0
      %v1007 = vadd.f32 0.0, %v1006
      %v1008 = vpop.f32.mrb[0].mxu0
      %v1009 = vadd.f32 0.0, %v1008
      %v1010 = vpop.f32.mrb[0].mxu0
      %v1011 = vadd.f32 0.0, %v1010
      %v1012 = vpop.f32.mrb[0].mxu0
      %v1013 = vadd.f32 0.0, %v1012
      %1014 = vdwg.mxu0
      %v1015 = vadd.f32 %v900, %v997
      %v1016 = vadd.f32 %v902, %v999
      %v1017 = vadd.f32 %v904, %v1001
      %v1018 = vadd.f32 %v906, %v1003
      %v1019 = vadd.f32 %v910, %v1007
      %v1020 = vadd.f32 %v912, %v1009
      %v1021 = vadd.f32 %v914, %v1011
      %v1022 = vadd.f32 %v916, %v1013
      %v1023 = vld [vmem:[%s8] sm:$0xf]
      %v1024 = vld [vmem:[%s8 + $0x4] sm:$0xf]
      %v1025 = vld [vmem:[%s8 + $0x8] sm:$0xf]
      %v1026 = vld [vmem:[%s8 + $0xc] sm:$0xf]
      %v1027 = vld [vmem:[%s697] sm:$0xff]
      %v1028 = vld [vmem:[%s697 + $0x8] sm:$0x33]
      %v1033 = vunpack.c.l.b16 %v1023
      %v1034 = vunpack.c.l.b16 %v1024
      %v1035 = vunpack.c.l.b16 %v1025
      %v1036 = vunpack.c.l.b16 %v1026
      %v1037 = vpack.c.b16 %v1034, %v1033
      %v1038 = vpack.c.b16 %v1036, %v1035
      %v1041 = vunpack.c.l.b16 %v1027
      %v1042 = vunpack.c.h.b16 %v1027
      %v1043 = vunpack.c.l.b16 %v1028
      %v1044 = vunpack.c.h.b16 %v1028
      %v1045 = vpack.c.b16 %v1043, %v1041
      %v1046 = vpack.c.b16 %v1044, %v1042
      %vm1047 = vcmask 97280
      %v1049 = vsel %vm1047, %v1037, 0
      %v1052 = vsel %vm1047, %v1038, 0
      %vm1054 = vcmask 1045504
      %v1056 = vsel %vm1054, %v1045, 0
      %v1059 = vsel %vm1054, %v1046, 0
      %1061 = vmatprep.subr.bf16.mxu0 %v1059
      %1062 = vmatpush1.bf16.msra.mxu0 %v1056
      %1063 = vmatprep.subr.bf16.mxu0 0
      %1064 = vmatpush1.bf16.msra.mxu0 0
      %1065 = vmatprep.subr.bf16.mxu0 0
      %1066 = vmatpush1.bf16.msra.mxu0 0
      %1067 = vmatprep.subr.bf16.mxu0 0
      %1068 = vmatpush1.bf16.msra.mxu0 0
      %1069 = vmatprep.subr.bf16.mxu0 0
      %1070 = vmatpush1.bf16.msra.mxu0 0
      %1071 = vmatprep.subr.bf16.mxu0 0
      %1072 = vmatpush1.bf16.msra.mxu0 0
      %1073 = vmatprep.subr.bf16.mxu0 0
      %1074 = vmatpush1.bf16.msra.mxu0 0
      %1075 = vmatprep.subr.bf16.mxu0 0
      %1076 = vmatpush1.bf16.msra.mxu0 0
      %1077 = vmatprep.subr.bf16.mxu0 0
      %1078 = vmatpush1.bf16.msra.mxu0 0
      %1079 = vmatprep.subr.bf16.mxu0 0
      %1080 = vmatpush1.bf16.msra.mxu0 0
      %1081 = vmatprep.subr.bf16.mxu0 0
      %1082 = vmatpush1.bf16.msra.mxu0 0
      %1083 = vmatprep.subr.bf16.mxu0 0
      %1084 = vmatpush1.bf16.msra.mxu0 0
      %1085 = vmatprep.subr.bf16.mxu0 0
      %1086 = vmatpush1.bf16.msra.mxu0 0
      %1087 = vmatprep.subr.bf16.mxu0 0
      %1088 = vmatpush1.bf16.msra.mxu0 0
      %1089 = vmatprep.subr.bf16.mxu0 0
      %1090 = vmatpush1.bf16.msra.mxu0 0
      %1091 = vmatprep.subr.bf16.mxu0 0
      %1092 = vmatpush1.bf16.msra.mxu0 0
      %1093 = vmatprep.mubr.bf16.mxu0 0
      %1094 = vmatmul.mubr.bf16.gmra.mrb[0].mxu0 %v1049
      %v1095 = vpop.f32.mrb[0].mxu0
      %v1096 = vadd.f32 0.0, %v1095
      %v1097 = vpop.f32.mrb[0].mxu0
      %v1098 = vadd.f32 0.0, %v1097
      %v1099 = vpop.f32.mrb[0].mxu0
      %v1100 = vadd.f32 0.0, %v1099
      %v1101 = vpop.f32.mrb[0].mxu0
      %v1102 = vadd.f32 0.0, %v1101
      %1103 = vmatprep.mubr.bf16.mxu0 0
      %1104 = vmatmul.mubr.bf16.gmra.mrb[0].mxu0 %v1052
      %v1105 = vpop.f32.mrb[0].mxu0
      %v1106 = vadd.f32 0.0, %v1105
      %v1107 = vpop.f32.mrb[0].mxu0
      %v1108 = vadd.f32 0.0, %v1107
      %v1109 = vpop.f32.mrb[0].mxu0
      %v1110 = vadd.f32 0.0, %v1109
      %v1111 = vpop.f32.mrb[0].mxu0
      %v1112 = vadd.f32 0.0, %v1111
      %1113 = vdwg.mxu0
      %v1114 = vadd.f32 %v1015, %v1096
      %v1115 = vadd.f32 %v1016, %v1098
      %v1116 = vadd.f32 %v1017, %v1100
      %v1117 = vadd.f32 %v1018, %v1102
      %v1118 = vadd.f32 %v1019, %v1106
      %v1119 = vadd.f32 %v1020, %v1108
      %v1120 = vadd.f32 %v1021, %v1110
      %v1121 = vadd.f32 %v1022, %v1112
      %v1122 = vld [vmem:[%s9] sm:$0xf]
      %v1123 = vld [vmem:[%s9 + $0x4] sm:$0xf]
      %v1124 = vld [vmem:[%s9 + $0x8] sm:$0xf]
      %v1125 = vld [vmem:[%s9 + $0xc] sm:$0xf]
      %v1126 = vld [vmem:[%s707] sm:$0xff]
      %v1127 = vld [vmem:[%s707 + $0x8] sm:$0x33]
      %v1132 = vunpack.c.l.b16 %v1122
      %v1133 = vunpack.c.l.b16 %v1123
      %v1134 = vunpack.c.l.b16 %v1124
      %v1135 = vunpack.c.l.b16 %v1125
      %v1136 = vpack.c.b16 %v1133, %v1132
      %v1137 = vpack.c.b16 %v1135, %v1134
      %v1140 = vunpack.c.l.b16 %v1126
      %v1141 = vunpack.c.h.b16 %v1126
      %v1142 = vunpack.c.l.b16 %v1127
      %v1143 = vunpack.c.h.b16 %v1127
      %v1144 = vpack.c.b16 %v1142, %v1140
      %v1145 = vpack.c.b16 %v1143, %v1141
      %v1147 = vsel %vm1047, %v1136, 0
      %v1150 = vsel %vm1047, %v1137, 0
      %v1153 = vsel %vm1054, %v1144, 0
      %v1156 = vsel %vm1054, %v1145, 0
      %1158 = vmatprep.subr.bf16.mxu0 %v1156
      %1159 = vmatpush1.bf16.msra.mxu0 %v1153
      %1160 = vmatprep.subr.bf16.mxu0 0
      %1161 = vmatpush1.bf16.msra.mxu0 0
      %1162 = vmatprep.subr.bf16.mxu0 0
      %1163 = vmatpush1.bf16.msra.mxu0 0
      %1164 = vmatprep.subr.bf16.mxu0 0
      %1165 = vmatpush1.bf16.msra.mxu0 0
      %1166 = vmatprep.subr.bf16.mxu0 0
      %1167 = vmatpush1.bf16.msra.mxu0 0
      %1168 = vmatprep.subr.bf16.mxu0 0
      %1169 = vmatpush1.bf16.msra.mxu0 0
      %1170 = vmatprep.subr.bf16.mxu0 0
      %1171 = vmatpush1.bf16.msra.mxu0 0
      %1172 = vmatprep.subr.bf16.mxu0 0
      %1173 = vmatpush1.bf16.msra.mxu0 0
      %1174 = vmatprep.subr.bf16.mxu0 0
      %1175 = vmatpush1.bf16.msra.mxu0 0
      %1176 = vmatprep.subr.bf16.mxu0 0
      %1177 = vmatpush1.bf16.msra.mxu0 0
      %1178 = vmatprep.subr.bf16.mxu0 0
      %1179 = vmatpush1.bf16.msra.mxu0 0
      %1180 = vmatprep.subr.bf16.mxu0 0
      %1181 = vmatpush1.bf16.msra.mxu0 0
      %1182 = vmatprep.subr.bf16.mxu0 0
      %1183 = vmatpush1.bf16.msra.mxu0 0
      %1184 = vmatprep.subr.bf16.mxu0 0
      %1185 = vmatpush1.bf16.msra.mxu0 0
      %1186 = vmatprep.subr.bf16.mxu0 0
      %1187 = vmatpush1.bf16.msra.mxu0 0
      %1188 = vmatprep.subr.bf16.mxu0 0
      %1189 = vmatpush1.bf16.msra.mxu0 0
      %1190 = vmatprep.mubr.bf16.mxu0 0
      %1191 = vmatmul.mubr.bf16.gmra.mrb[0].mxu0 %v1147
      %v1192 = vpop.f32.mrb[0].mxu0
      %v1193 = vadd.f32 0.0, %v1192
      %v1194 = vpop.f32.mrb[0].mxu0
      %v1195 = vadd.f32 0.0, %v1194
      %v1196 = vpop.f32.mrb[0].mxu0
      %v1197 = vadd.f32 0.0, %v1196
      %v1198 = vpop.f32.mrb[0].mxu0
      %v1199 = vadd.f32 0.0, %v1198
      %1200 = vmatprep.mubr.bf16.mxu0 0
      %1201 = vmatmul.mubr.bf16.gmra.mrb[0].mxu0 %v1150
      %v1202 = vpop.f32.mrb[0].mxu0
      %v1203 = vadd.f32 0.0, %v1202
      %v1204 = vpop.f32.mrb[0].mxu0
      %v1205 = vadd.f32 0.0, %v1204
      %v1206 = vpop.f32.mrb[0].mxu0
      %v1207 = vadd.f32 0.0, %v1206
      %v1208 = vpop.f32.mrb[0].mxu0
      %v1209 = vadd.f32 0.0, %v1208
      %1210 = vdwg.mxu0
      %v1211 = vadd.f32 %v1114, %v1193
      %v1212 = vadd.f32 %v1115, %v1195
      %v1213 = vadd.f32 %v1116, %v1197
      %v1214 = vadd.f32 %v1117, %v1199
      %v1215 = vadd.f32 %v1118, %v1203
      %v1216 = vadd.f32 %v1119, %v1205
      %v1217 = vadd.f32 %v1120, %v1207
      %v1218 = vadd.f32 %v1121, %v1209
      %v1219 = vld [vmem:[%s12] sm:$0xff]
      %v1220 = vld [vmem:[%s12 + $0x8] sm:$0xff]
      %v1221 = vld [vmem:[%s12 + $0x10] sm:$0xff]
      %v1222 = vld [vmem:[%s12 + $0x18] sm:$0xff]
      %1224 = vset.pattern.permute.xlu0 0
      %1225 = vperm.xlu0 %1224, %v1219
      %v1226 = vpop.permute.xlu0 %1225
      %1229 = vset.pattern.permute.xlu0 0
      %1230 = vperm.xlu0 %1229, %v1220
      %v1231 = vpop.permute.xlu0 %1230
      %1234 = vset.pattern.permute.xlu0 0
      %1235 = vperm.xlu0 %1234, %v1221
      %v1236 = vpop.permute.xlu0 %1235
      %1239 = vset.pattern.permute.xlu0 0
      %1240 = vperm.xlu0 %1239, %v1222
      %v1241 = vpop.permute.xlu0 %1240
      %v1243 = vadd.f32 %v1211, %v1226
      %v1244 = vadd.f32 %v1212, %v1226
      %v1245 = vadd.f32 %v1213, %v1231
      %v1246 = vadd.f32 %v1214, %v1231
      %v1247 = vadd.f32 %v1215, %v1236
      %v1248 = vadd.f32 %v1216, %v1236
      %v1249 = vadd.f32 %v1217, %v1241
      %v1250 = vadd.f32 %v1218, %v1241
      %v1251 = vmax.f32 %v1243, 0.0
      %v1252 = vmax.f32 %v1244, 0.0
      %v1253 = vmax.f32 %v1245, 0.0
      %v1254 = vmax.f32 %v1246, 0.0
      %v1255 = vmax.f32 %v1247, 0.0
      %v1256 = vmax.f32 %v1248, 0.0
      %v1257 = vmax.f32 %v1249, 0.0
      %v1258 = vmax.f32 %v1250, 0.0
      %v1259 = vpack.c.bf16 %v1253, %v1251
      %v1260 = vpack.c.bf16 %v1254, %v1252
      %v1261 = vpack.c.bf16 %v1257, %v1255
      %v1262 = vpack.c.bf16 %v1258, %v1256
      %v1263 = vld [vmem:[%s10] sm:$0x3]
      %v1264 = vld [vmem:[%s13] sm:$0x7]
      %1266 = vset.pattern.permute.xlu0 0
      %1267 = vperm.xlu0 %1266, %v1264
      %v1268 = vpop.permute.xlu0 %1267
      %vm1270 = vcmask 261120
      %v1272 = vsel %vm1270, %v1263, 0
      %1274 = vmatprep.subr.bf16.mxu0 %v1260
      %1275 = vmatpush1.bf16.msra.mxu0 %v1259
      %1276 = vmatprep.subr.bf16.mxu0 %v1262
      %1277 = vmatpush1.bf16.msra.mxu0 %v1261
      %1278 = vmatprep.subr.bf16.mxu0 0
      %1279 = vmatpush1.bf16.msra.mxu0 0
      %1280 = vmatprep.subr.bf16.mxu0 0
      %1281 = vmatpush1.bf16.msra.mxu0 0
      %1282 = vmatprep.subr.bf16.mxu0 0
      %1283 = vmatpush1.bf16.msra.mxu0 0
      %1284 = vmatprep.subr.bf16.mxu0 0
      %1285 = vmatpush1.bf16.msra.mxu0 0
      %1286 = vmatprep.subr.bf16.mxu0 0
      %1287 = vmatpush1.bf16.msra.mxu0 0
      %1288 = vmatprep.subr.bf16.mxu0 0
      %1289 = vmatpush1.bf16.msra.mxu0 0
      %1290 = vmatprep.subr.bf16.mxu0 0
      %1291 = vmatpush1.bf16.msra.mxu0 0
      %1292 = vmatprep.subr.bf16.mxu0 0
      %1293 = vmatpush1.bf16.msra.mxu0 0
      %1294 = vmatprep.subr.bf16.mxu0 0
      %1295 = vmatpush1.bf16.msra.mxu0 0
      %1296 = vmatprep.subr.bf16.mxu0 0
      %1297 = vmatpush1.bf16.msra.mxu0 0
      %1298 = vmatprep.subr.bf16.mxu0 0
      %1299 = vmatpush1.bf16.msra.mxu0 0
      %1300 = vmatprep.subr.bf16.mxu0 0
      %1301 = vmatpush1.bf16.msra.mxu0 0
      %1302 = vmatprep.subr.bf16.mxu0 0
      %1303 = vmatpush1.bf16.msra.mxu0 0
      %1304 = vmatprep.subr.bf16.mxu0 0
      %1305 = vmatpush1.bf16.msra.mxu0 0
      %1306 = vmatprep.mubr.bf16.mxu0 0
      %1307 = vmatmul.mubr.bf16.gmra.mrb[0].mxu0 %v1272
      %v1308 = vpop.f32.mrb[0].mxu0
      %v1309 = vadd.f32 %v1268, %v1308
      %v1310 = vpop.f32.mrb[0].mxu0
      %v1311 = vadd.f32 %v1268, %v1310
      %v1312 = vpop.f32.mrb[0].mxu0
      %v1313 = vpop.f32.mrb[0].mxu0
      %1314 = vdwg.mxu0
      %v1315 = vld [vmem:[%s11] sm:$0xf]
      %v1316 = vld [vmem:[%s11 + $0x4] sm:$0x3]
      %v1317 = vld [vmem:[%s14] sm:$0xff]
      %v1318 = vld [vmem:[%s14 + $0x8] sm:$0xf]
      %1320 = vset.pattern.permute.xlu0 0
      %1321 = vperm.xlu0 %1320, %v1317
      %v1322 = vpop.permute.xlu0 %1321
      %1325 = vset.pattern.permute.xlu0 0
      %1326 = vperm.xlu0 %1325, %v1318
      %v1327 = vpop.permute.xlu0 %1326
      %v1331 = vunpack.c.l.b16 %v1315
      %v1332 = vunpack.c.l.b16 %v1316
      %v1333 = vpack.c.b16 %v1332, %v1331
      %v1335 = vsel %vm1270, %v1333, 0
      %1337 = vmatprep.subr.bf16.mxu0 %v1260
      %1338 = vmatpush1.bf16.msra.mxu0 %v1259
      %1339 = vmatprep.subr.bf16.mxu0 %v1262
      %1340 = vmatpush1.bf16.msra.mxu0 %v1261
      %1341 = vmatprep.subr.bf16.mxu0 0
      %1342 = vmatpush1.bf16.msra.mxu0 0
      %1343 = vmatprep.subr.bf16.mxu0 0
      %1344 = vmatpush1.bf16.msra.mxu0 0
      %1345 = vmatprep.subr.bf16.mxu0 0
      %1346 = vmatpush1.bf16.msra.mxu0 0
      %1347 = vmatprep.subr.bf16.mxu0 0
      %1348 = vmatpush1.bf16.msra.mxu0 0
      %1349 = vmatprep.subr.bf16.mxu0 0
      %1350 = vmatpush1.bf16.msra.mxu0 0
      %1351 = vmatprep.subr.bf16.mxu0 0
      %1352 = vmatpush1.bf16.msra.mxu0 0
      %1353 = vmatprep.subr.bf16.mxu0 0
      %1354 = vmatpush1.bf16.msra.mxu0 0
      %1355 = vmatprep.subr.bf16.mxu0 0
      %1356 = vmatpush1.bf16.msra.mxu0 0
      %1357 = vmatprep.subr.bf16.mxu0 0
      %1358 = vmatpush1.bf16.msra.mxu0 0
      %1359 = vmatprep.subr.bf16.mxu0 0
      %1360 = vmatpush1.bf16.msra.mxu0 0
      %1361 = vmatprep.subr.bf16.mxu0 0
      %1362 = vmatpush1.bf16.msra.mxu0 0
      %1363 = vmatprep.subr.bf16.mxu0 0
      %1364 = vmatpush1.bf16.msra.mxu0 0
      %1365 = vmatprep.subr.bf16.mxu0 0
      %1366 = vmatpush1.bf16.msra.mxu0 0
      %1367 = vmatprep.subr.bf16.mxu0 0
      %1368 = vmatpush1.bf16.msra.mxu0 0
      %1369 = vmatprep.mubr.bf16.mxu0 0
      %1370 = vmatmul.mubr.bf16.gmra.mrb[0].mxu0 %v1335
      %v1371 = vpop.f32.mrb[0].mxu0
      %v1372 = vadd.f32 %v1322, %v1371
      %v1373 = vpop.f32.mrb[0].mxu0
      %v1374 = vadd.f32 %v1322, %v1373
      %v1375 = vpop.f32.mrb[0].mxu0
      %v1376 = vadd.f32 %v1327, %v1375
      %v1377 = vpop.f32.mrb[0].mxu0
      %v1378 = vadd.f32 %v1327, %v1377
      %1379 = vdwg.mxu0
      %v1380 = vtanh.pop %v1309
      %v1381 = vtanh.pop %v1311
      %v1382 = vpack.c.bf16 %v1380, %v1380
      %v1383 = vpack.c.bf16 %v1381, %v1381
      %v1386 = vcombine.low %v1382, %v1383
      %v1388 = vunpack.c.l.s4 1983009808
      %v1389 = vunpack.c.0.s8 %v1388
      %v1390 = vlaneseq
      %v1391 = vshrl.u32 %v1390, 7
      %v1392 = vsub.s32 %v1389, %v1391
      %v1393 = vrot.slane %v1386, %v1392
      %vm1395 = vcmask 1041408
      %vm1396 = vsmask.f32 1280
      %vm1397 = vmand %vm1395, %vm1396
      %vm1398 = vcmask 1043458
      %vm1399 = vsmask.f32 3328
      %vm1400 = vmand %vm1398, %vm1399
      %vm1401 = vmor %vm1400, %vm1397
      %v1402 = vld [vmem:[%s717] sm:$0xf]
      %v1403 = vsel %vm1401, %v1393, %v1402
      %1404 = vst [vmem:[%s717] sm:$0xf] %v1403
      %v1405 = vpack.c.bf16 %v1376, %v1372
      %v1406 = vpack.c.bf16 %v1378, %v1374
      %v1409 = vunpack.c.l.b16 %v1405
      %v1410 = vunpack.c.l.b16 %v1406
      %v1411 = vunpack.c.h.b16 %v1405
      %v1412 = vunpack.c.h.b16 %v1406
      %v1413 = vpack.c.b16 %v1410, %v1409
      %v1414 = vpack.c.b16 %v1412, %v1411
      %1417 = vst [vmem:[%s727] sm:$0xff] %v1413
      %1418 = vst [vmem:[%s727 + $0x8] sm:$0x33] %v1414
      %s1419 = smul.u32 2, %s33
      %p1420 = scmp.lt.s32.totalorder %s32, 1
      %s1421 = scalar_select %p1420, %s32, 1
      %p1422 = scmp.lt.s32.totalorder %s1419, 1
      %s1423 = scalar_select %p1422, %s1419, 1
      %s1424 = smul.addr %s1421, 2
      %s1425 = sadd.s32 %s1423, %s1424
      %s1426 = smul.addr %s1425, 2
      %s1427 = scalar_lea.vmem %s15, %s1426
      %s1428 = smul.u32 2, %s33
      %p1429 = scmp.lt.s32.totalorder %s32, 1
      %s1430 = scalar_select %p1429, %s32, 1
      %p1431 = scmp.lt.s32.totalorder %s1428, 1
      %s1432 = scalar_select %p1431, %s1428, 1
      %s1433 = smul.addr %s1430, 4
      %s1434 = sadd.s32 %s1432, %s1433
      %s1435 = smul.addr %s1434, 4
      %s1436 = scalar_lea.vmem %s16, %s1435
      // Predicated region
      $region81: #{_transfer_forward.1} parent=79 // pred_check
        %p1437 = pneg %p410
      $region82: #{_transfer_forward.1} parent=79 // pred_check_branch
        %1439 = sbr.rel (%p1437) target = $region84
      $region83: #{_transfer_forward.1} parent=79 // pred_region
        %s1440 = smul.u32 2, %s33
      $region84: #{_transfer_forward.1} parent=79 // pred_fallthru
        _
      // Predicated region
      $region85: #{_transfer_forward.1} parent=79 // pred_check
        %p1441 = pneg %p438
      $region86: #{_transfer_forward.1} parent=79 // pred_check_branch
        %1443 = sbr.rel (%p1441) target = $region88
      $region87: #{_transfer_forward.1} parent=79 // pred_region
        %s1444 = smul.u32 2, %s33
      $region88: #{_transfer_forward.1} parent=79 // pred_fallthru
        _
    $region80: #{_transfer_forward.1} parent=5 // pred_fallthru
      _
    %p1445 = scmp.le.s32.totalorder 2, %s23
    // Predicated region
    $region89: #{_transfer_forward.1} parent=5 // pred_check
      %p1446 = pneg %p1445
    $region90: #{_transfer_forward.1} parent=5 // pred_check_branch
      %1448 = sbr.rel (%p1446) target = $region92
    $region91: #{_transfer_forward.1} parent=5 // pred_region
      %s1449 = ssub.s32 %s23, 2
      // Predicated region
      $region93: #{_transfer_forward.1} parent=91 // pred_check
        %p1450 = pneg %p416
      $region94: #{_transfer_forward.1} parent=91 // pred_check_branch
        %1452 = sbr.rel (%p1450) target = $region96
      $region95: #{_transfer_forward.1} parent=91 // pred_region
        %s1453 = smul.u32 2, %s35
        %p1454 = scmp.lt.s32.totalorder %s34, 1
        %s1455 = scalar_select %p1454, %s34, 1
        %p1456 = scmp.lt.s32.totalorder %s1453, 1
        %s1457 = scalar_select %p1456, %s1453, 1
        %s1458 = smul.addr %s1455, 2
        %s1459 = sadd.s32 %s1457, %s1458
        %s1460 = smul.addr %s1459, 2
        %s1461 = scalar_lea.vmem %s15, %s1460
      $region96: #{_transfer_forward.1} parent=91 // pred_fallthru
        _
      // Predicated region
      $region97: #{_transfer_forward.1} parent=91 // pred_check
        %p1462 = pneg %p444
      $region98: #{_transfer_forward.1} parent=91 // pred_check_branch
        %1464 = sbr.rel (%p1462) target = $region100
      $region99: #{_transfer_forward.1} parent=91 // pred_region
        %s1465 = smul.u32 2, %s35
        %p1466 = scmp.lt.s32.totalorder %s34, 1
        %s1467 = scalar_select %p1466, %s34, 1
        %p1468 = scmp.lt.s32.totalorder %s1465, 1
        %s1469 = scalar_select %p1468, %s1465, 1
        %s1470 = smul.addr %s1467, 4
        %s1471 = sadd.s32 %s1469, %s1470
        %s1472 = smul.addr %s1471, 4
        %s1473 = scalar_lea.vmem %s16, %s1472
      $region100: #{_transfer_forward.1} parent=91 // pred_fallthru
        _
    $region92: #{_transfer_forward.1} parent=5 // pred_fallthru
      _
  $region6: #{_transfer_forward.1} parent=0 // loop_footer
    %s27 = sadd.s32 1, %s23
  $region7: #{_transfer_forward.1} parent=0 // loop_footer_branch
    %22 = sbr.rel target = $region3
  $region8: #{_transfer_forward.1} parent=0 // loop_exit
    _

</llo_original>
